<compile_context>
chip_gen: v5e
topology: v5e:2x2
jax: 0.10.0
libtpu: 0.0.40
codegen_flags: <defaults>
</compile_context>

<pallas_src>
import jax
import jax.numpy as jnp
from jax.experimental import pallas as pl
from jax.experimental.pallas import tpu as pltpu

EPS = 1e-5          # BatchNorm2d default eps
MXU_BF16 = False    # set True for ~3x MXU rate (re-validate the 1e-4 assert)


def _round_up(x, m):
    return (x + m - 1) // m * m


def _pad_channels(c):
    # Small channel counts: pad only to a sublane-friendly multiple of 8 so
    # HBM traffic stays ~real-size.  Large counts: pad to full 128 lanes.
    return _round_up(c, 8) if c < 128 else _round_up(c, 128)


def make_kernel(B, Hp, Wp, Ci, Co, use_bf16):
    M = B * Hp * Wp
    # scratch W layout: cols [0..6] unused, col 7 = left halo, cols [8..Wp+7]
    # = interior (sublane-aligned start), col Wp+8 = right halo.
    Wtot = Wp + 9
    f32 = jnp.float32

    def mx(a):
        return a.astype(jnp.bfloat16) if use_bf16 else a

    def kernel(x_ref, w1_ref, b1_ref, w2_ref, b2_ref, o_ref,
               pad1_ref, pad2_ref):
        # x_ref : (B, 2*Hp, Wp, 2*Ci)  -- even/odd W columns folded into lanes
        # w*_ref: (9, Cin_tap, Cout)   -- BN scale folded into the weights
        # b*_ref: (1, Cout)            -- folded BN shift
        # o_ref : (B, Hp, Wp, Co)
        # pad*  : (B, Hp+2, Wtot, C)   -- zero-halo scratch, one per conv

        # ---------------- MaxPool2d(2), fully in-kernel ----------------
        x = x_ref[...]                                     # (B, 2Hp, Wp, 2Ci)
        xw = jnp.maximum(x[..., :Ci], x[..., Ci:])         # max over W pairs
        xw = xw.reshape(B, Hp, 2, Wp, Ci)                  # split H (major dim)
        pooled = jnp.maximum(xw[:, :, 0], xw[:, :, 1])     # (B, Hp, Wp, Ci)

        # ---- zero only the 4 halo strips (interior overwritten below);
        #      unconditional so it stays correct when the grid is sharded ----
        def zero_halo(p_ref, C):
            p_ref[:, 0:1, :, :] = jnp.zeros((B, 1, Wtot, C), f32)
            p_ref[:, Hp + 1:Hp + 2, :, :] = jnp.zeros((B, 1, Wtot, C), f32)
            p_ref[:, :, 7:8, :] = jnp.zeros((B, Hp + 2, 1, C), f32)
            p_ref[:, :, Wp + 8:Wp + 9, :] = jnp.zeros((B, Hp + 2, 1, C), f32)

        zero_halo(pad1_ref, Ci)
        zero_halo(pad2_ref, Co)

        def conv3x3_relu(p_ref, feat, w_ref, shift, Kc, Oc):
            # feat: (B, Hp, Wp, Kc) -> (B, Hp, Wp, Oc)
            p_ref[:, 1:Hp + 1, 8:8 + Wp, :] = feat         # aligned interior
            w = w_ref[...]                                 # (9, Kc, Oc)
            acc = jnp.zeros((M, Oc), f32)
            for dx in range(3):                            # 3 sublane-shifted slabs
                slab = p_ref[:, :, 7 + dx:7 + dx + Wp, :]  # (B, Hp+2, Wp, Kc)
                for dy in range(3):                        # dy = free major-dim slice
                    lhs = slab[:, dy:dy + Hp].reshape(M, Kc)
                    acc = acc + jnp.dot(mx(lhs), mx(w[dy * 3 + dx]),
                                        preferred_element_type=f32)
            y = jnp.maximum(acc + shift, 0.0)              # folded BN shift + ReLU
            return y.reshape(B, Hp, Wp, Oc)

        y1 = conv3x3_relu(pad1_ref, pooled, w1_ref, b1_ref[...], Ci, Co)
        y2 = conv3x3_relu(pad2_ref, y1, w2_ref, b2_ref[...], Co, Co)
        o_ref[...] = y2.astype(o_ref.dtype)

    return kernel


def init_params(key, cin, cout):
    ks = jax.random.split(key, 12)
    p = {}
    p["w1"] = 0.2 * jax.random.normal(ks[0], (cout, cin, 3, 3), jnp.float32)
    p["b1"] = 0.1 * jax.random.normal(ks[1], (cout,), jnp.float32)
    p["g1"] = 1.0 + 0.1 * jax.random.normal(ks[2], (cout,), jnp.float32)
    p["beta1"] = 0.1 * jax.random.normal(ks[3], (cout,), jnp.float32)
    p["m1"] = 0.1 * jax.random.normal(ks[4], (cout,), jnp.float32)
    p["v1"] = jax.random.uniform(ks[5], (cout,), jnp.float32, 0.5, 1.5)
    p["w2"] = 0.2 * jax.random.normal(ks[6], (cout, cout, 3, 3), jnp.float32)
    p["b2"] = 0.1 * jax.random.normal(ks[7], (cout,), jnp.float32)
    p["g2"] = 1.0 + 0.1 * jax.random.normal(ks[8], (cout,), jnp.float32)
    p["beta2"] = 0.1 * jax.random.normal(ks[9], (cout,), jnp.float32)
    p["m2"] = 0.1 * jax.random.normal(ks[10], (cout,), jnp.float32)
    p["v2"] = jax.random.uniform(ks[11], (cout,), jnp.float32, 0.5, 1.5)
    return p


def _fold_conv_bn(w_oihw, bias, gamma, beta, mean, var, cin_p, cout_p):
    # OIHW -> (kh, kw, cin, cout); fold the BN scale directly into the weight
    # output columns (host-side, one-time), pad channels, reshape to the
    # per-tap layout (9, cin_p, cout_p).  Remaining per-channel shift folds
    # conv bias + BN mean/beta.
    cout, cin = w_oihw.shape[0], w_oihw.shape[1]
    scale = gamma / jnp.sqrt(var + EPS)                         # (cout,)
    shift = (bias - mean) * scale + beta                        # (cout,)
    wk = jnp.transpose(w_oihw, (2, 3, 1, 0)) * scale            # (3,3,ci,co)
    wk = jnp.pad(wk, ((0, 0), (0, 0), (0, cin_p - cin), (0, cout_p - cout)))
    wk = wk.reshape(9, cin_p, cout_p)
    shift = jnp.pad(shift, (0, cout_p - cout)).reshape(1, cout_p)
    return wk, shift


def downsampling_forward(x_nchw, p, use_bf16=MXU_BF16):
    # NCHW in/out (PyTorch convention); kernel works in lane-padded NHWC.
    N, C, H, W = x_nchw.shape
    Cout = p["w1"].shape[0]
    assert H % 2 == 0 and W % 2 == 0, "MaxPool2d(2) path assumes even H, W"
    Hp, Wp = H // 2, W // 2
    Ci = _pad_channels(C)
    Co = _pad_channels(Cout)

    # images per grid step: target matmul M >= 128, but keep >= 2 grid steps
    # when N >= 2 so both v7x TensorCores get work on the "parallel" axis.
    m_img = Hp * Wp
    bt = min(N, max(1, -(-128 // m_img)))
    if N >= 2 and (N + bt - 1) // bt < 2:
        bt = max(1, N // 2)
    n_pad = _round_up(N, bt)          # pad batch instead of shrinking bt
    grid = n_pad // bt

    # layout glue (one fused XLA pass): NCHW->NHWC, small channel pad, then a
    # free contiguous reshape folding even/odd W columns into the lane dim.
    x_nhwc = jnp.transpose(x_nchw, (0, 2, 3, 1))
    x_nhwc = jnp.pad(x_nhwc, ((0, n_pad - N), (0, 0), (0, 0), (0, Ci - C)))
    x_in = x_nhwc.reshape(n_pad, H, Wp, 2 * Ci)

    w1k, sh1 = _fold_conv_bn(p["w1"], p["b1"], p["g1"], p["beta1"],
                             p["m1"], p["v1"], Ci, Co)
    w2k, sh2 = _fold_conv_bn(p["w2"], p["b2"], p["g2"], p["beta2"],
                             p["m2"], p["v2"], Co, Co)

    kernel = make_kernel(bt, Hp, Wp, Ci, Co, use_bf16)
    Wtot = Wp + 9

    out = pl.pallas_call(
        kernel,
        out_shape=jax.ShapeDtypeStruct((n_pad, Hp, Wp, Co), jnp.float32),
        grid_spec=pltpu.PrefetchScalarGridSpec(
            num_scalar_prefetch=0,
            grid=(grid,),
            in_specs=[
                pl.BlockSpec((bt, H, Wp, 2 * Ci), lambda n: (n, 0, 0, 0)),
                pl.BlockSpec((9, Ci, Co), lambda n: (0, 0, 0)),
                pl.BlockSpec((1, Co), lambda n: (0, 0)),
                pl.BlockSpec((9, Co, Co), lambda n: (0, 0, 0)),
                pl.BlockSpec((1, Co), lambda n: (0, 0)),
            ],
            out_specs=pl.BlockSpec((bt, Hp, Wp, Co), lambda n: (n, 0, 0, 0)),
            scratch_shapes=[
                pltpu.VMEM((bt, Hp + 2, Wtot, Ci), jnp.float32),
                pltpu.VMEM((bt, Hp + 2, Wtot, Co), jnp.float32),
            ],
        ),
        compiler_params=pltpu.CompilerParams(
            dimension_semantics=("parallel",),
            # above the 16/32 MiB scoped defaults, headroom under v7x's 64 MiB
            vmem_limit_bytes=48 * 1024 * 1024),
    )(x_in, w1k, sh1, w2k, sh2)

    # drop the channel/batch padding and return NCHW
    return jnp.transpose(out[:N, :, :, :Cout], (0, 3, 1, 2))


def ref_forward(x, p):
    # pure-JAX reference (NCHW, matches PyTorch eval-mode semantics)
    def conv_bn_relu(x, w, b, g, beta, m, v):
        y = jax.lax.conv_general_dilated(
            x, w, window_strides=(1, 1), padding=((1, 1), (1, 1)),
            dimension_numbers=("NCHW", "OIHW", "NCHW"))
        y = y + b[None, :, None, None]
        y = ((y - m[None, :, None, None])
             * (g / jnp.sqrt(v + EPS))[None, :, None, None]
             + beta[None, :, None, None])
        return jnp.maximum(y, 0.0)

    N, C, H, W = x.shape
    xp = x.reshape(N, C, H // 2, 2, W // 2, 2).max(axis=(3, 5))
    y = conv_bn_relu(xp, p["w1"], p["b1"], p["g1"], p["beta1"], p["m1"], p["v1"])
    y = conv_bn_relu(y, p["w2"], p["b2"], p["g2"], p["beta2"], p["m2"], p["v2"])
    return y


if __name__ == "__main__":
    key = jax.random.PRNGKey(0)
    kx, kp = jax.random.split(key)
    N, Cin, Cout, H, W = 2, 4, 8, 16, 16

    x = jax.random.normal(kx, (N, Cin, H, W), jnp.float32)
    params = init_params(kp, Cin, Cout)

    out = jax.block_until_ready(downsampling_forward(x, params))
    ref = jax.block_until_ready(ref_forward(x, params))

    assert out.shape == (N, Cout, H // 2, W // 2), out.shape
    max_err = float(jnp.max(jnp.abs(out - ref)))
    assert max_err < 1e-4, f"mismatch vs reference: max abs err = {max_err}"
    print("KERNEL_OK")
</pallas_src>

<mosaic_0001>
module attributes {stable_mosaic.version = 11 : i64} {
  func.func @kernel(%arg0: i32, %arg1: memref<1x16x8x16xf32, #tpu.memory_space<vmem>>, %arg2: memref<9x8x8xf32, #tpu.memory_space<vmem>>, %arg3: memref<1x8xf32, #tpu.memory_space<vmem>>, %arg4: memref<9x8x8xf32, #tpu.memory_space<vmem>>, %arg5: memref<1x8xf32, #tpu.memory_space<vmem>>, %arg6: memref<1x8x8x8xf32, #tpu.memory_space<vmem>>, %arg7: memref<1x10x17x8xf32, #tpu.memory_space<vmem>>, %arg8: memref<1x10x17x8xf32, #tpu.memory_space<vmem>>) attributes {dimension_semantics = [#tpu.dimension_semantics<parallel>], iteration_bounds = array<i64: 2>, scalar_prefetch = 0 : i64, scratch_operands = 2 : i64, tpu.core_type = #tpu.core_type<tc>, window_params = [{transform_indices = @transform_0, window_bounds = array<i64: 1, 16, 8, 16>}, {pipeline_mode = #tpu.pipeline_mode<synchronous>, transform_indices = @transform_1, window_bounds = array<i64: 9, 8, 8>}, {pipeline_mode = #tpu.pipeline_mode<synchronous>, transform_indices = @transform_2, window_bounds = array<i64: 1, 8>}, {pipeline_mode = #tpu.pipeline_mode<synchronous>, transform_indices = @transform_3, window_bounds = array<i64: 9, 8, 8>}, {pipeline_mode = #tpu.pipeline_mode<synchronous>, transform_indices = @transform_4, window_bounds = array<i64: 1, 8>}, {transform_indices = @transform_5, window_bounds = array<i64: 1, 8, 8, 8>}]} {
    %c0 = arith.constant 0 : index
    %c0_0 = arith.constant 0 : index
    %c0_1 = arith.constant 0 : index
    %c0_2 = arith.constant 0 : index
    %0 = vector.load %arg1[%c0, %c0_0, %c0_1, %c0_2] : memref<1x16x8x16xf32, #tpu.memory_space<vmem>>, vector<1x16x8x16xf32>
    %1 = vector.extract_strided_slice %0 {offsets = [0, 0, 0, 0], sizes = [1, 16, 8, 8], strides = [1, 1, 1, 1]} : vector<1x16x8x16xf32> to vector<1x16x8x8xf32>
    %2 = vector.extract_strided_slice %0 {offsets = [0, 0, 0, 8], sizes = [1, 16, 8, 8], strides = [1, 1, 1, 1]} : vector<1x16x8x16xf32> to vector<1x16x8x8xf32>
    %3 = arith.maximumf %1, %2 : vector<1x16x8x8xf32>
    %4 = vector.shape_cast %3 : vector<1x16x8x8xf32> to vector<1x8x2x8x8xf32>
    %5 = vector.extract_strided_slice %4 {offsets = [0, 0, 0, 0, 0], sizes = [1, 8, 1, 8, 8], strides = [1, 1, 1, 1, 1]} : vector<1x8x2x8x8xf32> to vector<1x8x1x8x8xf32>
    %6 = vector.shape_cast %5 : vector<1x8x1x8x8xf32> to vector<1x8x8x8xf32>
    %7 = vector.extract_strided_slice %4 {offsets = [0, 0, 1, 0, 0], sizes = [1, 8, 1, 8, 8], strides = [1, 1, 1, 1, 1]} : vector<1x8x2x8x8xf32> to vector<1x8x1x8x8xf32>
    %8 = vector.shape_cast %7 : vector<1x8x1x8x8xf32> to vector<1x8x8x8xf32>
    %9 = arith.maximumf %6, %8 : vector<1x8x8x8xf32>
    %cst = arith.constant 0.000000e+00 : f32
    %10 = vector.broadcast %cst : f32 to vector<1x1x17x8xf32>
    %c0_3 = arith.constant 0 : index
    %c0_4 = arith.constant 0 : index
    %c0_5 = arith.constant 0 : index
    %c0_6 = arith.constant 0 : index
    %11 = vector.load %arg7[%c0_3, %c0_4, %c0_5, %c0_6] : memref<1x10x17x8xf32, #tpu.memory_space<vmem>>, vector<1x1x17x8xf32>
    tpu.vector_store %arg7[%c0_3, %c0_4, %c0_5, %c0_6], %10 {strides = array<i32>} : memref<1x10x17x8xf32, #tpu.memory_space<vmem>>, vector<1x1x17x8xf32>,
    %cst_7 = arith.constant 0.000000e+00 : f32
    %12 = vector.broadcast %cst_7 : f32 to vector<1x1x17x8xf32>
    %c0_8 = arith.constant 0 : index
    %c9 = arith.constant 9 : index
    %c0_9 = arith.constant 0 : index
    %c0_10 = arith.constant 0 : index
    %13 = vector.load %arg7[%c0_8, %c9, %c0_9, %c0_10] : memref<1x10x17x8xf32, #tpu.memory_space<vmem>>, vector<1x1x17x8xf32>
    tpu.vector_store %arg7[%c0_8, %c9, %c0_9, %c0_10], %12 {strides = array<i32>} : memref<1x10x17x8xf32, #tpu.memory_space<vmem>>, vector<1x1x17x8xf32>,
    %cst_11 = arith.constant 0.000000e+00 : f32
    %14 = vector.broadcast %cst_11 : f32 to vector<1x10x1x8xf32>
    %c0_12 = arith.constant 0 : index
    %c0_13 = arith.constant 0 : index
    %c7 = arith.constant 7 : index
    %c0_14 = arith.constant 0 : index
    %15 = vector.load %arg7[%c0_12, %c0_13, %c7, %c0_14] : memref<1x10x17x8xf32, #tpu.memory_space<vmem>>, vector<1x10x1x8xf32>
    tpu.vector_store %arg7[%c0_12, %c0_13, %c7, %c0_14], %14 {strides = array<i32>} : memref<1x10x17x8xf32, #tpu.memory_space<vmem>>, vector<1x10x1x8xf32>,
    %cst_15 = arith.constant 0.000000e+00 : f32
    %16 = vector.broadcast %cst_15 : f32 to vector<1x10x1x8xf32>
    %c0_16 = arith.constant 0 : index
    %c0_17 = arith.constant 0 : index
    %c16 = arith.constant 16 : index
    %c0_18 = arith.constant 0 : index
    %17 = vector.load %arg7[%c0_16, %c0_17, %c16, %c0_18] : memref<1x10x17x8xf32, #tpu.memory_space<vmem>>, vector<1x10x1x8xf32>
    tpu.vector_store %arg7[%c0_16, %c0_17, %c16, %c0_18], %16 {strides = array<i32>} : memref<1x10x17x8xf32, #tpu.memory_space<vmem>>, vector<1x10x1x8xf32>,
    %cst_19 = arith.constant 0.000000e+00 : f32
    %18 = vector.broadcast %cst_19 : f32 to vector<1x1x17x8xf32>
    %c0_20 = arith.constant 0 : index
    %c0_21 = arith.constant 0 : index
    %c0_22 = arith.constant 0 : index
    %c0_23 = arith.constant 0 : index
    %19 = vector.load %arg8[%c0_20, %c0_21, %c0_22, %c0_23] : memref<1x10x17x8xf32, #tpu.memory_space<vmem>>, vector<1x1x17x8xf32>
    tpu.vector_store %arg8[%c0_20, %c0_21, %c0_22, %c0_23], %18 {strides = array<i32>} : memref<1x10x17x8xf32, #tpu.memory_space<vmem>>, vector<1x1x17x8xf32>,
    %cst_24 = arith.constant 0.000000e+00 : f32
    %20 = vector.broadcast %cst_24 : f32 to vector<1x1x17x8xf32>
    %c0_25 = arith.constant 0 : index
    %c9_26 = arith.constant 9 : index
    %c0_27 = arith.constant 0 : index
    %c0_28 = arith.constant 0 : index
    %21 = vector.load %arg8[%c0_25, %c9_26, %c0_27, %c0_28] : memref<1x10x17x8xf32, #tpu.memory_space<vmem>>, vector<1x1x17x8xf32>
    tpu.vector_store %arg8[%c0_25, %c9_26, %c0_27, %c0_28], %20 {strides = array<i32>} : memref<1x10x17x8xf32, #tpu.memory_space<vmem>>, vector<1x1x17x8xf32>,
    %cst_29 = arith.constant 0.000000e+00 : f32
    %22 = vector.broadcast %cst_29 : f32 to vector<1x10x1x8xf32>
    %c0_30 = arith.constant 0 : index
    %c0_31 = arith.constant 0 : index
    %c7_32 = arith.constant 7 : index
    %c0_33 = arith.constant 0 : index
    %23 = vector.load %arg8[%c0_30, %c0_31, %c7_32, %c0_33] : memref<1x10x17x8xf32, #tpu.memory_space<vmem>>, vector<1x10x1x8xf32>
    tpu.vector_store %arg8[%c0_30, %c0_31, %c7_32, %c0_33], %22 {strides = array<i32>} : memref<1x10x17x8xf32, #tpu.memory_space<vmem>>, vector<1x10x1x8xf32>,
    %cst_34 = arith.constant 0.000000e+00 : f32
    %24 = vector.broadcast %cst_34 : f32 to vector<1x10x1x8xf32>
    %c0_35 = arith.constant 0 : index
    %c0_36 = arith.constant 0 : index
    %c16_37 = arith.constant 16 : index
    %c0_38 = arith.constant 0 : index
    %25 = vector.load %arg8[%c0_35, %c0_36, %c16_37, %c0_38] : memref<1x10x17x8xf32, #tpu.memory_space<vmem>>, vector<1x10x1x8xf32>
    tpu.vector_store %arg8[%c0_35, %c0_36, %c16_37, %c0_38], %24 {strides = array<i32>} : memref<1x10x17x8xf32, #tpu.memory_space<vmem>>, vector<1x10x1x8xf32>,
    %c0_39 = arith.constant 0 : index
    %c0_40 = arith.constant 0 : index
    %26 = vector.load %arg3[%c0_39, %c0_40] : memref<1x8xf32, #tpu.memory_space<vmem>>, vector<1x8xf32>
    %c0_41 = arith.constant 0 : index
    %c1 = arith.constant 1 : index
    %c8 = arith.constant 8 : index
    %c0_42 = arith.constant 0 : index
    %27 = vector.load %arg7[%c0_41, %c1, %c8, %c0_42] : memref<1x10x17x8xf32, #tpu.memory_space<vmem>>, vector<1x8x8x8xf32>
    tpu.vector_store %arg7[%c0_41, %c1, %c8, %c0_42], %9 {strides = array<i32>} : memref<1x10x17x8xf32, #tpu.memory_space<vmem>>, vector<1x8x8x8xf32>,
    %c0_43 = arith.constant 0 : index
    %c0_44 = arith.constant 0 : index
    %c0_45 = arith.constant 0 : index
    %28 = vector.load %arg2[%c0_43, %c0_44, %c0_45] : memref<9x8x8xf32, #tpu.memory_space<vmem>>, vector<9x8x8xf32>
    %cst_46 = arith.constant 0.000000e+00 : f32
    %29 = vector.broadcast %cst_46 : f32 to vector<64x8xf32>
    %c0_47 = arith.constant 0 : index
    %c0_48 = arith.constant 0 : index
    %c7_49 = arith.constant 7 : index
    %c0_50 = arith.constant 0 : index
    %30 = vector.load %arg7[%c0_47, %c0_48, %c7_49, %c0_50] : memref<1x10x17x8xf32, #tpu.memory_space<vmem>>, vector<1x10x8x8xf32>
    %31 = vector.extract_strided_slice %30 {offsets = [0, 0, 0, 0], sizes = [1, 8, 8, 8], strides = [1, 1, 1, 1]} : vector<1x10x8x8xf32> to vector<1x8x8x8xf32>
    %32 = vector.shape_cast %31 : vector<1x8x8x8xf32> to vector<64x8xf32>
    %33 = vector.extract_strided_slice %28 {offsets = [0, 0, 0], sizes = [1, 8, 8], strides = [1, 1, 1]} : vector<9x8x8xf32> to vector<1x8x8xf32>
    %34 = vector.shape_cast %33 : vector<1x8x8xf32> to vector<8x8xf32>
    %cst_51 = arith.constant dense<0.000000e+00> : vector<64x8xf32>
    %35 = tpu.matmul %32, %34, %cst_51 {dimension_numbers = #tpu.dot_dimension_numbers<[1], [0], [0], [1], [0, 0, 1, 1], [], []>} : vector<64x8xf32>, vector<8x8xf32>, vector<64x8xf32> -> vector<64x8xf32>
    %36 = arith.addf %29, %35 : vector<64x8xf32>
    %37 = vector.extract_strided_slice %30 {offsets = [0, 1, 0, 0], sizes = [1, 8, 8, 8], strides = [1, 1, 1, 1]} : vector<1x10x8x8xf32> to vector<1x8x8x8xf32>
    %38 = vector.shape_cast %37 : vector<1x8x8x8xf32> to vector<64x8xf32>
    %39 = vector.extract_strided_slice %28 {offsets = [3, 0, 0], sizes = [1, 8, 8], strides = [1, 1, 1]} : vector<9x8x8xf32> to vector<1x8x8xf32>
    %40 = vector.shape_cast %39 : vector<1x8x8xf32> to vector<8x8xf32>
    %cst_52 = arith.constant dense<0.000000e+00> : vector<64x8xf32>
    %41 = tpu.matmul %38, %40, %cst_52 {dimension_numbers = #tpu.dot_dimension_numbers<[1], [0], [0], [1], [0, 0, 1, 1], [], []>} : vector<64x8xf32>, vector<8x8xf32>, vector<64x8xf32> -> vector<64x8xf32>
    %42 = arith.addf %36, %41 : vector<64x8xf32>
    %43 = vector.extract_strided_slice %30 {offsets = [0, 2, 0, 0], sizes = [1, 8, 8, 8], strides = [1, 1, 1, 1]} : vector<1x10x8x8xf32> to vector<1x8x8x8xf32>
    %44 = vector.shape_cast %43 : vector<1x8x8x8xf32> to vector<64x8xf32>
    %45 = vector.extract_strided_slice %28 {offsets = [6, 0, 0], sizes = [1, 8, 8], strides = [1, 1, 1]} : vector<9x8x8xf32> to vector<1x8x8xf32>
    %46 = vector.shape_cast %45 : vector<1x8x8xf32> to vector<8x8xf32>
    %cst_53 = arith.constant dense<0.000000e+00> : vector<64x8xf32>
    %47 = tpu.matmul %44, %46, %cst_53 {dimension_numbers = #tpu.dot_dimension_numbers<[1], [0], [0], [1], [0, 0, 1, 1], [], []>} : vector<64x8xf32>, vector<8x8xf32>, vector<64x8xf32> -> vector<64x8xf32>
    %48 = arith.addf %42, %47 : vector<64x8xf32>
    %c0_54 = arith.constant 0 : index
    %c0_55 = arith.constant 0 : index
    %c8_56 = arith.constant 8 : index
    %c0_57 = arith.constant 0 : index
    %49 = vector.load %arg7[%c0_54, %c0_55, %c8_56, %c0_57] : memref<1x10x17x8xf32, #tpu.memory_space<vmem>>, vector<1x10x8x8xf32>
    %50 = vector.extract_strided_slice %49 {offsets = [0, 0, 0, 0], sizes = [1, 8, 8, 8], strides = [1, 1, 1, 1]} : vector<1x10x8x8xf32> to vector<1x8x8x8xf32>
    %51 = vector.shape_cast %50 : vector<1x8x8x8xf32> to vector<64x8xf32>
    %52 = vector.extract_strided_slice %28 {offsets = [1, 0, 0], sizes = [1, 8, 8], strides = [1, 1, 1]} : vector<9x8x8xf32> to vector<1x8x8xf32>
    %53 = vector.shape_cast %52 : vector<1x8x8xf32> to vector<8x8xf32>
    %cst_58 = arith.constant dense<0.000000e+00> : vector<64x8xf32>
    %54 = tpu.matmul %51, %53, %cst_58 {dimension_numbers = #tpu.dot_dimension_numbers<[1], [0], [0], [1], [0, 0, 1, 1], [], []>} : vector<64x8xf32>, vector<8x8xf32>, vector<64x8xf32> -> vector<64x8xf32>
    %55 = arith.addf %48, %54 : vector<64x8xf32>
    %56 = vector.extract_strided_slice %49 {offsets = [0, 1, 0, 0], sizes = [1, 8, 8, 8], strides = [1, 1, 1, 1]} : vector<1x10x8x8xf32> to vector<1x8x8x8xf32>
    %57 = vector.shape_cast %56 : vector<1x8x8x8xf32> to vector<64x8xf32>
    %58 = vector.extract_strided_slice %28 {offsets = [4, 0, 0], sizes = [1, 8, 8], strides = [1, 1, 1]} : vector<9x8x8xf32> to vector<1x8x8xf32>
    %59 = vector.shape_cast %58 : vector<1x8x8xf32> to vector<8x8xf32>
    %cst_59 = arith.constant dense<0.000000e+00> : vector<64x8xf32>
    %60 = tpu.matmul %57, %59, %cst_59 {dimension_numbers = #tpu.dot_dimension_numbers<[1], [0], [0], [1], [0, 0, 1, 1], [], []>} : vector<64x8xf32>, vector<8x8xf32>, vector<64x8xf32> -> vector<64x8xf32>
    %61 = arith.addf %55, %60 : vector<64x8xf32>
    %62 = vector.extract_strided_slice %49 {offsets = [0, 2, 0, 0], sizes = [1, 8, 8, 8], strides = [1, 1, 1, 1]} : vector<1x10x8x8xf32> to vector<1x8x8x8xf32>
    %63 = vector.shape_cast %62 : vector<1x8x8x8xf32> to vector<64x8xf32>
    %64 = vector.extract_strided_slice %28 {offsets = [7, 0, 0], sizes = [1, 8, 8], strides = [1, 1, 1]} : vector<9x8x8xf32> to vector<1x8x8xf32>
    %65 = vector.shape_cast %64 : vector<1x8x8xf32> to vector<8x8xf32>
    %cst_60 = arith.constant dense<0.000000e+00> : vector<64x8xf32>
    %66 = tpu.matmul %63, %65, %cst_60 {dimension_numbers = #tpu.dot_dimension_numbers<[1], [0], [0], [1], [0, 0, 1, 1], [], []>} : vector<64x8xf32>, vector<8x8xf32>, vector<64x8xf32> -> vector<64x8xf32>
    %67 = arith.addf %61, %66 : vector<64x8xf32>
    %c0_61 = arith.constant 0 : index
    %c0_62 = arith.constant 0 : index
    %c9_63 = arith.constant 9 : index
    %c0_64 = arith.constant 0 : index
    %68 = vector.load %arg7[%c0_61, %c0_62, %c9_63, %c0_64] : memref<1x10x17x8xf32, #tpu.memory_space<vmem>>, vector<1x10x8x8xf32>
    %69 = vector.extract_strided_slice %68 {offsets = [0, 0, 0, 0], sizes = [1, 8, 8, 8], strides = [1, 1, 1, 1]} : vector<1x10x8x8xf32> to vector<1x8x8x8xf32>
    %70 = vector.shape_cast %69 : vector<1x8x8x8xf32> to vector<64x8xf32>
    %71 = vector.extract_strided_slice %28 {offsets = [2, 0, 0], sizes = [1, 8, 8], strides = [1, 1, 1]} : vector<9x8x8xf32> to vector<1x8x8xf32>
    %72 = vector.shape_cast %71 : vector<1x8x8xf32> to vector<8x8xf32>
    %cst_65 = arith.constant dense<0.000000e+00> : vector<64x8xf32>
    %73 = tpu.matmul %70, %72, %cst_65 {dimension_numbers = #tpu.dot_dimension_numbers<[1], [0], [0], [1], [0, 0, 1, 1], [], []>} : vector<64x8xf32>, vector<8x8xf32>, vector<64x8xf32> -> vector<64x8xf32>
    %74 = arith.addf %67, %73 : vector<64x8xf32>
    %75 = vector.extract_strided_slice %68 {offsets = [0, 1, 0, 0], sizes = [1, 8, 8, 8], strides = [1, 1, 1, 1]} : vector<1x10x8x8xf32> to vector<1x8x8x8xf32>
    %76 = vector.shape_cast %75 : vector<1x8x8x8xf32> to vector<64x8xf32>
    %77 = vector.extract_strided_slice %28 {offsets = [5, 0, 0], sizes = [1, 8, 8], strides = [1, 1, 1]} : vector<9x8x8xf32> to vector<1x8x8xf32>
    %78 = vector.shape_cast %77 : vector<1x8x8xf32> to vector<8x8xf32>
    %cst_66 = arith.constant dense<0.000000e+00> : vector<64x8xf32>
    %79 = tpu.matmul %76, %78, %cst_66 {dimension_numbers = #tpu.dot_dimension_numbers<[1], [0], [0], [1], [0, 0, 1, 1], [], []>} : vector<64x8xf32>, vector<8x8xf32>, vector<64x8xf32> -> vector<64x8xf32>
    %80 = arith.addf %74, %79 : vector<64x8xf32>
    %81 = vector.extract_strided_slice %68 {offsets = [0, 2, 0, 0], sizes = [1, 8, 8, 8], strides = [1, 1, 1, 1]} : vector<1x10x8x8xf32> to vector<1x8x8x8xf32>
    %82 = vector.shape_cast %81 : vector<1x8x8x8xf32> to vector<64x8xf32>
    %83 = vector.extract_strided_slice %28 {offsets = [8, 0, 0], sizes = [1, 8, 8], strides = [1, 1, 1]} : vector<9x8x8xf32> to vector<1x8x8xf32>
    %84 = vector.shape_cast %83 : vector<1x8x8xf32> to vector<8x8xf32>
    %cst_67 = arith.constant dense<0.000000e+00> : vector<64x8xf32>
    %85 = tpu.matmul %82, %84, %cst_67 {dimension_numbers = #tpu.dot_dimension_numbers<[1], [0], [0], [1], [0, 0, 1, 1], [], []>} : vector<64x8xf32>, vector<8x8xf32>, vector<64x8xf32> -> vector<64x8xf32>
    %86 = arith.addf %80, %85 : vector<64x8xf32>
    %87 = vector.broadcast %26 : vector<1x8xf32> to vector<64x8xf32>
    %88 = arith.addf %86, %87 : vector<64x8xf32>
    %cst_68 = arith.constant 0.000000e+00 : f32
    %89 = vector.broadcast %cst_68 : f32 to vector<64x8xf32>
    %90 = arith.maximumf %88, %89 : vector<64x8xf32>
    %91 = vector.shape_cast %90 : vector<64x8xf32> to vector<1x8x8x8xf32>
    %c0_69 = arith.constant 0 : index
    %c0_70 = arith.constant 0 : index
    %92 = vector.load %arg5[%c0_69, %c0_70] : memref<1x8xf32, #tpu.memory_space<vmem>>, vector<1x8xf32>
    %c0_71 = arith.constant 0 : index
    %c1_72 = arith.constant 1 : index
    %c8_73 = arith.constant 8 : index
    %c0_74 = arith.constant 0 : index
    %93 = vector.load %arg8[%c0_71, %c1_72, %c8_73, %c0_74] : memref<1x10x17x8xf32, #tpu.memory_space<vmem>>, vector<1x8x8x8xf32>
    tpu.vector_store %arg8[%c0_71, %c1_72, %c8_73, %c0_74], %91 {strides = array<i32>} : memref<1x10x17x8xf32, #tpu.memory_space<vmem>>, vector<1x8x8x8xf32>,
    %c0_75 = arith.constant 0 : index
    %c0_76 = arith.constant 0 : index
    %c0_77 = arith.constant 0 : index
    %94 = vector.load %arg4[%c0_75, %c0_76, %c0_77] : memref<9x8x8xf32, #tpu.memory_space<vmem>>, vector<9x8x8xf32>
    %cst_78 = arith.constant 0.000000e+00 : f32
    %95 = vector.broadcast %cst_78 : f32 to vector<64x8xf32>
    %c0_79 = arith.constant 0 : index
    %c0_80 = arith.constant 0 : index
    %c7_81 = arith.constant 7 : index
    %c0_82 = arith.constant 0 : index
    %96 = vector.load %arg8[%c0_79, %c0_80, %c7_81, %c0_82] : memref<1x10x17x8xf32, #tpu.memory_space<vmem>>, vector<1x10x8x8xf32>
    %97 = vector.extract_strided_slice %96 {offsets = [0, 0, 0, 0], sizes = [1, 8, 8, 8], strides = [1, 1, 1, 1]} : vector<1x10x8x8xf32> to vector<1x8x8x8xf32>
    %98 = vector.shape_cast %97 : vector<1x8x8x8xf32> to vector<64x8xf32>
    %99 = vector.extract_strided_slice %94 {offsets = [0, 0, 0], sizes = [1, 8, 8], strides = [1, 1, 1]} : vector<9x8x8xf32> to vector<1x8x8xf32>
    %100 = vector.shape_cast %99 : vector<1x8x8xf32> to vector<8x8xf32>
    %cst_83 = arith.constant dense<0.000000e+00> : vector<64x8xf32>
    %101 = tpu.matmul %98, %100, %cst_83 {dimension_numbers = #tpu.dot_dimension_numbers<[1], [0], [0], [1], [0, 0, 1, 1], [], []>} : vector<64x8xf32>, vector<8x8xf32>, vector<64x8xf32> -> vector<64x8xf32>
    %102 = arith.addf %95, %101 : vector<64x8xf32>
    %103 = vector.extract_strided_slice %96 {offsets = [0, 1, 0, 0], sizes = [1, 8, 8, 8], strides = [1, 1, 1, 1]} : vector<1x10x8x8xf32> to vector<1x8x8x8xf32>
    %104 = vector.shape_cast %103 : vector<1x8x8x8xf32> to vector<64x8xf32>
    %105 = vector.extract_strided_slice %94 {offsets = [3, 0, 0], sizes = [1, 8, 8], strides = [1, 1, 1]} : vector<9x8x8xf32> to vector<1x8x8xf32>
    %106 = vector.shape_cast %105 : vector<1x8x8xf32> to vector<8x8xf32>
    %cst_84 = arith.constant dense<0.000000e+00> : vector<64x8xf32>
    %107 = tpu.matmul %104, %106, %cst_84 {dimension_numbers = #tpu.dot_dimension_numbers<[1], [0], [0], [1], [0, 0, 1, 1], [], []>} : vector<64x8xf32>, vector<8x8xf32>, vector<64x8xf32> -> vector<64x8xf32>
    %108 = arith.addf %102, %107 : vector<64x8xf32>
    %109 = vector.extract_strided_slice %96 {offsets = [0, 2, 0, 0], sizes = [1, 8, 8, 8], strides = [1, 1, 1, 1]} : vector<1x10x8x8xf32> to vector<1x8x8x8xf32>
    %110 = vector.shape_cast %109 : vector<1x8x8x8xf32> to vector<64x8xf32>
    %111 = vector.extract_strided_slice %94 {offsets = [6, 0, 0], sizes = [1, 8, 8], strides = [1, 1, 1]} : vector<9x8x8xf32> to vector<1x8x8xf32>
    %112 = vector.shape_cast %111 : vector<1x8x8xf32> to vector<8x8xf32>
    %cst_85 = arith.constant dense<0.000000e+00> : vector<64x8xf32>
    %113 = tpu.matmul %110, %112, %cst_85 {dimension_numbers = #tpu.dot_dimension_numbers<[1], [0], [0], [1], [0, 0, 1, 1], [], []>} : vector<64x8xf32>, vector<8x8xf32>, vector<64x8xf32> -> vector<64x8xf32>
    %114 = arith.addf %108, %113 : vector<64x8xf32>
    %c0_86 = arith.constant 0 : index
    %c0_87 = arith.constant 0 : index
    %c8_88 = arith.constant 8 : index
    %c0_89 = arith.constant 0 : index
    %115 = vector.load %arg8[%c0_86, %c0_87, %c8_88, %c0_89] : memref<1x10x17x8xf32, #tpu.memory_space<vmem>>, vector<1x10x8x8xf32>
    %116 = vector.extract_strided_slice %115 {offsets = [0, 0, 0, 0], sizes = [1, 8, 8, 8], strides = [1, 1, 1, 1]} : vector<1x10x8x8xf32> to vector<1x8x8x8xf32>
    %117 = vector.shape_cast %116 : vector<1x8x8x8xf32> to vector<64x8xf32>
    %118 = vector.extract_strided_slice %94 {offsets = [1, 0, 0], sizes = [1, 8, 8], strides = [1, 1, 1]} : vector<9x8x8xf32> to vector<1x8x8xf32>
    %119 = vector.shape_cast %118 : vector<1x8x8xf32> to vector<8x8xf32>
    %cst_90 = arith.constant dense<0.000000e+00> : vector<64x8xf32>
    %120 = tpu.matmul %117, %119, %cst_90 {dimension_numbers = #tpu.dot_dimension_numbers<[1], [0], [0], [1], [0, 0, 1, 1], [], []>} : vector<64x8xf32>, vector<8x8xf32>, vector<64x8xf32> -> vector<64x8xf32>
    %121 = arith.addf %114, %120 : vector<64x8xf32>
    %122 = vector.extract_strided_slice %115 {offsets = [0, 1, 0, 0], sizes = [1, 8, 8, 8], strides = [1, 1, 1, 1]} : vector<1x10x8x8xf32> to vector<1x8x8x8xf32>
    %123 = vector.shape_cast %122 : vector<1x8x8x8xf32> to vector<64x8xf32>
    %124 = vector.extract_strided_slice %94 {offsets = [4, 0, 0], sizes = [1, 8, 8], strides = [1, 1, 1]} : vector<9x8x8xf32> to vector<1x8x8xf32>
    %125 = vector.shape_cast %124 : vector<1x8x8xf32> to vector<8x8xf32>
    %cst_91 = arith.constant dense<0.000000e+00> : vector<64x8xf32>
    %126 = tpu.matmul %123, %125, %cst_91 {dimension_numbers = #tpu.dot_dimension_numbers<[1], [0], [0], [1], [0, 0, 1, 1], [], []>} : vector<64x8xf32>, vector<8x8xf32>, vector<64x8xf32> -> vector<64x8xf32>
    %127 = arith.addf %121, %126 : vector<64x8xf32>
    %128 = vector.extract_strided_slice %115 {offsets = [0, 2, 0, 0], sizes = [1, 8, 8, 8], strides = [1, 1, 1, 1]} : vector<1x10x8x8xf32> to vector<1x8x8x8xf32>
    %129 = vector.shape_cast %128 : vector<1x8x8x8xf32> to vector<64x8xf32>
    %130 = vector.extract_strided_slice %94 {offsets = [7, 0, 0], sizes = [1, 8, 8], strides = [1, 1, 1]} : vector<9x8x8xf32> to vector<1x8x8xf32>
    %131 = vector.shape_cast %130 : vector<1x8x8xf32> to vector<8x8xf32>
    %cst_92 = arith.constant dense<0.000000e+00> : vector<64x8xf32>
    %132 = tpu.matmul %129, %131, %cst_92 {dimension_numbers = #tpu.dot_dimension_numbers<[1], [0], [0], [1], [0, 0, 1, 1], [], []>} : vector<64x8xf32>, vector<8x8xf32>, vector<64x8xf32> -> vector<64x8xf32>
    %133 = arith.addf %127, %132 : vector<64x8xf32>
    %c0_93 = arith.constant 0 : index
    %c0_94 = arith.constant 0 : index
    %c9_95 = arith.constant 9 : index
    %c0_96 = arith.constant 0 : index
    %134 = vector.load %arg8[%c0_93, %c0_94, %c9_95, %c0_96] : memref<1x10x17x8xf32, #tpu.memory_space<vmem>>, vector<1x10x8x8xf32>
    %135 = vector.extract_strided_slice %134 {offsets = [0, 0, 0, 0], sizes = [1, 8, 8, 8], strides = [1, 1, 1, 1]} : vector<1x10x8x8xf32> to vector<1x8x8x8xf32>
    %136 = vector.shape_cast %135 : vector<1x8x8x8xf32> to vector<64x8xf32>
    %137 = vector.extract_strided_slice %94 {offsets = [2, 0, 0], sizes = [1, 8, 8], strides = [1, 1, 1]} : vector<9x8x8xf32> to vector<1x8x8xf32>
    %138 = vector.shape_cast %137 : vector<1x8x8xf32> to vector<8x8xf32>
    %cst_97 = arith.constant dense<0.000000e+00> : vector<64x8xf32>
    %139 = tpu.matmul %136, %138, %cst_97 {dimension_numbers = #tpu.dot_dimension_numbers<[1], [0], [0], [1], [0, 0, 1, 1], [], []>} : vector<64x8xf32>, vector<8x8xf32>, vector<64x8xf32> -> vector<64x8xf32>
    %140 = arith.addf %133, %139 : vector<64x8xf32>
    %141 = vector.extract_strided_slice %134 {offsets = [0, 1, 0, 0], sizes = [1, 8, 8, 8], strides = [1, 1, 1, 1]} : vector<1x10x8x8xf32> to vector<1x8x8x8xf32>
    %142 = vector.shape_cast %141 : vector<1x8x8x8xf32> to vector<64x8xf32>
    %143 = vector.extract_strided_slice %94 {offsets = [5, 0, 0], sizes = [1, 8, 8], strides = [1, 1, 1]} : vector<9x8x8xf32> to vector<1x8x8xf32>
    %144 = vector.shape_cast %143 : vector<1x8x8xf32> to vector<8x8xf32>
    %cst_98 = arith.constant dense<0.000000e+00> : vector<64x8xf32>
    %145 = tpu.matmul %142, %144, %cst_98 {dimension_numbers = #tpu.dot_dimension_numbers<[1], [0], [0], [1], [0, 0, 1, 1], [], []>} : vector<64x8xf32>, vector<8x8xf32>, vector<64x8xf32> -> vector<64x8xf32>
    %146 = arith.addf %140, %145 : vector<64x8xf32>
    %147 = vector.extract_strided_slice %134 {offsets = [0, 2, 0, 0], sizes = [1, 8, 8, 8], strides = [1, 1, 1, 1]} : vector<1x10x8x8xf32> to vector<1x8x8x8xf32>
    %148 = vector.shape_cast %147 : vector<1x8x8x8xf32> to vector<64x8xf32>
    %149 = vector.extract_strided_slice %94 {offsets = [8, 0, 0], sizes = [1, 8, 8], strides = [1, 1, 1]} : vector<9x8x8xf32> to vector<1x8x8xf32>
    %150 = vector.shape_cast %149 : vector<1x8x8xf32> to vector<8x8xf32>
    %cst_99 = arith.constant dense<0.000000e+00> : vector<64x8xf32>
    %151 = tpu.matmul %148, %150, %cst_99 {dimension_numbers = #tpu.dot_dimension_numbers<[1], [0], [0], [1], [0, 0, 1, 1], [], []>} : vector<64x8xf32>, vector<8x8xf32>, vector<64x8xf32> -> vector<64x8xf32>
    %152 = arith.addf %146, %151 : vector<64x8xf32>
    %153 = vector.broadcast %92 : vector<1x8xf32> to vector<64x8xf32>
    %154 = arith.addf %152, %153 : vector<64x8xf32>
    %cst_100 = arith.constant 0.000000e+00 : f32
    %155 = vector.broadcast %cst_100 : f32 to vector<64x8xf32>
    %156 = arith.maximumf %154, %155 : vector<64x8xf32>
    %157 = vector.shape_cast %156 : vector<64x8xf32> to vector<1x8x8x8xf32>
    %c0_101 = arith.constant 0 : index
    %c0_102 = arith.constant 0 : index
    %c0_103 = arith.constant 0 : index
    %c0_104 = arith.constant 0 : index
    %158 = vector.load %arg6[%c0_101, %c0_102, %c0_103, %c0_104] : memref<1x8x8x8xf32, #tpu.memory_space<vmem>>, vector<1x8x8x8xf32>
    tpu.vector_store %arg6[%c0_101, %c0_102, %c0_103, %c0_104], %157 {strides = array<i32>} : memref<1x8x8x8xf32, #tpu.memory_space<vmem>>, vector<1x8x8x8xf32>,
    return
  }
  func.func @transform_0(%arg0: i32) -> (i32, i32, i32, i32) {
    %c0_i32 = arith.constant 0 : i32
    %c0_i32_0 = arith.constant 0 : i32
    %c0_i32_1 = arith.constant 0 : i32
    %c0_i32_2 = arith.constant 0 : i32
    return %arg0, %c0_i32, %c0_i32_0, %c0_i32_1 : i32, i32, i32, i32
  }
  func.func @transform_1(%arg0: i32) -> (i32, i32, i32) {
    %c0_i32 = arith.constant 0 : i32
    %c0_i32_0 = arith.constant 0 : i32
    %c0_i32_1 = arith.constant 0 : i32
    %c0_i32_2 = arith.constant 0 : i32
    return %c0_i32, %c0_i32_0, %c0_i32_1 : i32, i32, i32
  }
  func.func @transform_2(%arg0: i32) -> (i32, i32) {
    %c0_i32 = arith.constant 0 : i32
    %c0_i32_0 = arith.constant 0 : i32
    %c0_i32_1 = arith.constant 0 : i32
    return %c0_i32, %c0_i32_0 : i32, i32
  }
  func.func @transform_3(%arg0: i32) -> (i32, i32, i32) {
    %c0_i32 = arith.constant 0 : i32
    %c0_i32_0 = arith.constant 0 : i32
    %c0_i32_1 = arith.constant 0 : i32
    %c0_i32_2 = arith.constant 0 : i32
    return %c0_i32, %c0_i32_0, %c0_i32_1 : i32, i32, i32
  }
  func.func @transform_4(%arg0: i32) -> (i32, i32) {
    %c0_i32 = arith.constant 0 : i32
    %c0_i32_0 = arith.constant 0 : i32
    %c0_i32_1 = arith.constant 0 : i32
    return %c0_i32, %c0_i32_0 : i32, i32
  }
  func.func @transform_5(%arg0: i32) -> (i32, i32, i32, i32) {
    %c0_i32 = arith.constant 0 : i32
    %c0_i32_0 = arith.constant 0 : i32
    %c0_i32_1 = arith.constant 0 : i32
    %c0_i32_2 = arith.constant 0 : i32
    return %arg0, %c0_i32, %c0_i32_0, %c0_i32_1 : i32, i32, i32, i32
  }
}

</mosaic_0001>

<llo_original>
// kernel: tpu_custom_call.1
$region0: #{tpu_custom_call.1}
  #allocation0 [shape = 'u32[]', space=smem, size = 0x4, offset = 0x4, fixed_abs, tag = 'smem constant byte address 0x4 - core index']
  #allocation1 [shape = 'u32[72,128]{1,0:T(1,128)}', space=vmem, size = 0x9000, scoped, tag = 'internal scratch']
  #allocation2 [shape = 'f32[1,10,17,8]{3,2,1,0:T(8,128)}', space=vmem, size = 0x1e000, scoped, tag = 'scratch operand']
  #allocation3 [shape = 'f32[1,10,17,8]{3,2,1,0:T(8,128)}', space=vmem, size = 0x1e000, scoped, tag = 'scratch operand']
  %s0 = inlined_call_operand.hbm [shape: f32[2,16,8,16], index: 0, kind: input, shape index: {}]
  %s1 = inlined_call_operand.vmem [shape: f32[9,8,8], index: 1, kind: input, shape index: {}]
  %s2 = inlined_call_operand.vmem [shape: f32[1,8], index: 2, kind: input, shape index: {}]
  %s3 = inlined_call_operand.vmem [shape: f32[9,8,8], index: 3, kind: input, shape index: {}]
  %s4 = inlined_call_operand.vmem [shape: f32[1,8], index: 4, kind: input, shape index: {}]
  %s5 = inlined_call_operand.hbm [shape: f32[2,8,8,8], index: 5, kind: output, shape index: {}]
  %s6 = sld [smem:[#allocation0]]
  $region57: #{tpu_custom_call.1} parent=0
    _
  %s8 = ssub.s32 1, %s6
  %s9 = scalar_select 0, %s8, %s6
  $region1: #{tpu_custom_call.1} parent=0
    #allocation4 [shape = 'u8[131072]{0}', space=vmem, size = 0x20000, scoped, tag = 'input window, operand 0']
    #allocation5 [shape = 's32[2]{0}', space=sflag, size = 0x8, scoped, tag = 'scoped memory for tpu_custom_call.1']
    #allocation6 [shape = 's32[2]{0}', space=sflag, size = 0x8, scoped, tag = 'scoped memory for tpu_custom_call.1']
    #allocation7 [shape = 'u8[65536]{0}', space=vmem, size = 0x10000, scoped, tag = 'output window, operand 0']
    %10 = vsyncpa [#allocation5], 0
    %s11 = scalar_lea.sflag [#allocation5], 1
    %12 = vsyncpa %s11, 0
    %13 = vsyncpa [#allocation6], 0
    %s14 = scalar_lea.sflag [#allocation6], 1
    %15 = vsyncpa %s14, 0
    loop: start=0, step=1, limit=4
    $region2: #{tpu_custom_call.1} parent=1 // loop_pre_header
      _
    $region3: #{tpu_custom_call.1} parent=1 // loop_header
      %s17 = sphi 0, %s21
      %p18 = scmp.ge.s32.totalorder %s17, 4
      %s27 = sphi 0, %s29
      %s30 = sphi 0, %s27
      %s31 = sphi 0, %s30
      %s47 = sphi 0, %s31
      %s51 = sphi 0, %s51
      %s53 = sphi 0, %s51
      %s54 = sphi 0, %s53
      %s68 = sphi 0, %s54
      %s72 = sphi 0, %s72
      %s74 = sphi 0, %s72
      %s75 = sphi 0, %s74
      %s89 = sphi 0, %s75
      %s93 = sphi 0, %s93
      %s95 = sphi 0, %s93
      %s96 = sphi 0, %s95
      %s110 = sphi 0, %s96
      %s114 = sphi 0, %s114
      %s116 = sphi 0, %s114
      %s117 = sphi 0, %s116
      %s131 = sphi 0, %s117
      %s137 = sphi 0, %s139
      %s140 = sphi 0, %s137
      %s141 = sphi 0, %s140
      %s157 = sphi 0, %s141
    $region4: #{tpu_custom_call.1} parent=1 // loop_header_branch
      %20 = sbr.rel (%p18) target = $region8
    $region5: #{tpu_custom_call.1} parent=1 // loop_body
      %s22 = ssub.s32 %s17, 1
      %s23 = ssub.s32 %s17, 2
      %s24 = sadd.s32 %s17, 1
      %s25 = ssub.s32 %s17, %s24
      %p26 = scmp.eq.s32.totalorder %s25, 0
      %s28 = sadd.s32 %s27, 1
      %s29 = scalar_select %p26, %s27, %s28
      %p32 = pneg %p26
      %p33 = scmp.eq.s32.totalorder %s17, 1
      %p34 = por %p32, %p33
      %p35 = scmp.ne.s32.totalorder %s27, %s30
      %p36 = scmp.eq.s32.totalorder %s17, 0
      %p37 = por %p35, %p36
      %p38 = scmp.ne.s32.totalorder %s27, %s30
      %p39 = scmp.eq.s32.totalorder %s22, 1
      %p40 = por %p38, %p39
      %p41 = scmp.ne.s32.totalorder %s30, %s31
      %p42 = scmp.eq.s32.totalorder %s22, 0
      %p43 = por %p41, %p42
      %p44 = scmp.ne.s32.totalorder %s30, %s31
      %p45 = scmp.eq.s32.totalorder %s23, 1
      %p46 = por %p44, %p45
      %p48 = scmp.ne.s32.totalorder %s31, %s47
      %p49 = scmp.eq.s32.totalorder %s23, 0
      %p50 = por %p48, %p49
      %s52 = sadd.s32 %s51, 1
      %p55 = scmp.eq.s32.totalorder %s17, 1
      %p56 = scmp.ne.s32.totalorder %s51, %s53
      %p57 = scmp.eq.s32.totalorder %s17, 0
      %p58 = por %p56, %p57
      %p59 = scmp.ne.s32.totalorder %s51, %s53
      %p60 = scmp.eq.s32.totalorder %s22, 1
      %p61 = por %p59, %p60
      %p62 = scmp.ne.s32.totalorder %s53, %s54
      %p63 = scmp.eq.s32.totalorder %s22, 0
      %p64 = por %p62, %p63
      %p65 = scmp.ne.s32.totalorder %s53, %s54
      %p66 = scmp.eq.s32.totalorder %s23, 1
      %p67 = por %p65, %p66
      %p69 = scmp.ne.s32.totalorder %s54, %s68
      %p70 = scmp.eq.s32.totalorder %s23, 0
      %p71 = por %p69, %p70
      %s73 = sadd.s32 %s72, 1
      %p76 = scmp.eq.s32.totalorder %s17, 1
      %p77 = scmp.ne.s32.totalorder %s72, %s74
      %p78 = scmp.eq.s32.totalorder %s17, 0
      %p79 = por %p77, %p78
      %p80 = scmp.ne.s32.totalorder %s72, %s74
      %p81 = scmp.eq.s32.totalorder %s22, 1
      %p82 = por %p80, %p81
      %p83 = scmp.ne.s32.totalorder %s74, %s75
      %p84 = scmp.eq.s32.totalorder %s22, 0
      %p85 = por %p83, %p84
      %p86 = scmp.ne.s32.totalorder %s74, %s75
      %p87 = scmp.eq.s32.totalorder %s23, 1
      %p88 = por %p86, %p87
      %p90 = scmp.ne.s32.totalorder %s75, %s89
      %p91 = scmp.eq.s32.totalorder %s23, 0
      %p92 = por %p90, %p91
      %s94 = sadd.s32 %s93, 1
      %p97 = scmp.eq.s32.totalorder %s17, 1
      %p98 = scmp.ne.s32.totalorder %s93, %s95
      %p99 = scmp.eq.s32.totalorder %s17, 0
      %p100 = por %p98, %p99
      %p101 = scmp.ne.s32.totalorder %s93, %s95
      %p102 = scmp.eq.s32.totalorder %s22, 1
      %p103 = por %p101, %p102
      %p104 = scmp.ne.s32.totalorder %s95, %s96
      %p105 = scmp.eq.s32.totalorder %s22, 0
      %p106 = por %p104, %p105
      %p107 = scmp.ne.s32.totalorder %s95, %s96
      %p108 = scmp.eq.s32.totalorder %s23, 1
      %p109 = por %p107, %p108
      %p111 = scmp.ne.s32.totalorder %s96, %s110
      %p112 = scmp.eq.s32.totalorder %s23, 0
      %p113 = por %p111, %p112
      %s115 = sadd.s32 %s114, 1
      %p118 = scmp.eq.s32.totalorder %s17, 1
      %p119 = scmp.ne.s32.totalorder %s114, %s116
      %p120 = scmp.eq.s32.totalorder %s17, 0
      %p121 = por %p119, %p120
      %p122 = scmp.ne.s32.totalorder %s114, %s116
      %p123 = scmp.eq.s32.totalorder %s22, 1
      %p124 = por %p122, %p123
      %p125 = scmp.ne.s32.totalorder %s116, %s117
      %p126 = scmp.eq.s32.totalorder %s22, 0
      %p127 = por %p125, %p126
      %p128 = scmp.ne.s32.totalorder %s116, %s117
      %p129 = scmp.eq.s32.totalorder %s23, 1
      %p130 = por %p128, %p129
      %p132 = scmp.ne.s32.totalorder %s117, %s131
      %p133 = scmp.eq.s32.totalorder %s23, 0
      %p134 = por %p132, %p133
      %s135 = ssub.s32 %s17, %s24
      %p136 = scmp.eq.s32.totalorder %s135, 0
      %s138 = sadd.s32 %s137, 1
      %s139 = scalar_select %p136, %s137, %s138
      %p142 = pneg %p136
      %p143 = scmp.eq.s32.totalorder %s17, 1
      %p144 = por %p142, %p143
      %p145 = scmp.ne.s32.totalorder %s137, %s140
      %p146 = scmp.eq.s32.totalorder %s17, 0
      %p147 = por %p145, %p146
      %p148 = scmp.ne.s32.totalorder %s137, %s140
      %p149 = scmp.eq.s32.totalorder %s22, 1
      %p150 = por %p148, %p149
      %p151 = scmp.ne.s32.totalorder %s140, %s141
      %p152 = scmp.eq.s32.totalorder %s22, 0
      %p153 = por %p151, %p152
      %p154 = scmp.ne.s32.totalorder %s140, %s141
      %p155 = scmp.eq.s32.totalorder %s23, 1
      %p156 = por %p154, %p155
      %p158 = scmp.ne.s32.totalorder %s141, %s157
      %p159 = scmp.eq.s32.totalorder %s23, 0
      %p160 = por %p158, %p159
      %p161 = scmp.le.s32.totalorder 1, %s17
      %p162 = scmp.lt.s32.totalorder %s17, 3
      %p163 = pnand %p161, %p162
      %p164 = pneg %p163
      // Predicated region
      $region9: #{tpu_custom_call.1} parent=5 // pred_check
        _
      $region10: #{tpu_custom_call.1} parent=5 // pred_check_branch
        %166 = sbr.rel (%p163) target = $region12
      $region11: #{tpu_custom_call.1} parent=5 // pred_region
        %s167 = ssub.s32 %s17, 1
        // Predicated region
        $region13: #{tpu_custom_call.1} parent=11 // pred_check
          %p168 = pneg %p64
        $region14: #{tpu_custom_call.1} parent=11 // pred_check_branch
          %170 = sbr.rel (%p168) target = $region16
        $region15: #{tpu_custom_call.1} parent=11 // pred_region
          _
        $region16: #{tpu_custom_call.1} parent=11 // pred_fallthru
          _
        // Predicated region
        $region17: #{tpu_custom_call.1} parent=11 // pred_check
          %p171 = pneg %p85
        $region18: #{tpu_custom_call.1} parent=11 // pred_check_branch
          %173 = sbr.rel (%p171) target = $region20
        $region19: #{tpu_custom_call.1} parent=11 // pred_region
          _
        $region20: #{tpu_custom_call.1} parent=11 // pred_fallthru
          _
        // Predicated region
        $region21: #{tpu_custom_call.1} parent=11 // pred_check
          %p174 = pneg %p106
        $region22: #{tpu_custom_call.1} parent=11 // pred_check_branch
          %176 = sbr.rel (%p174) target = $region24
        $region23: #{tpu_custom_call.1} parent=11 // pred_region
          _
        $region24: #{tpu_custom_call.1} parent=11 // pred_fallthru
          _
        // Predicated region
        $region25: #{tpu_custom_call.1} parent=11 // pred_check
          %p177 = pneg %p127
        $region26: #{tpu_custom_call.1} parent=11 // pred_check_branch
          %179 = sbr.rel (%p177) target = $region28
        $region27: #{tpu_custom_call.1} parent=11 // pred_region
          _
        $region28: #{tpu_custom_call.1} parent=11 // pred_fallthru
          _
      $region12: #{tpu_custom_call.1} parent=5 // pred_fallthru
        _
      %p180 = scmp.lt.s32.totalorder %s17, 2
      // Predicated region
      $region29: #{tpu_custom_call.1} parent=5 // pred_check
        %p181 = pneg %p180
      $region30: #{tpu_custom_call.1} parent=5 // pred_check_branch
        %183 = sbr.rel (%p181) target = $region32
      $region31: #{tpu_custom_call.1} parent=5 // pred_region
        // Predicated region
        $region33: #{tpu_custom_call.1} parent=31 // pred_check
          %p184 = pneg %p37
        $region34: #{tpu_custom_call.1} parent=31 // pred_check_branch
          %186 = sbr.rel (%p184) target = $region36
        $region35: #{tpu_custom_call.1} parent=31 // pred_region
          %s187 = sand.u32 %s27, 1
          %s188 = scalar_lea.sflag [#allocation5], %s187
          %s189 = sand.u32 %s27, 1
          %s190 = smul.addr %s189, 128
          %s191 = scalar_lea.vmem [#allocation4], %s190
          %193 = vsyncadd %s188, 0
          %s194 = smul.addr %s17, 16
          %s195 = smul.addr %s194, 8
          %s196 = scalar_lea.hbm %s0, %s195
          %s197 = sshll.u32 %s196, 4
          %s198 = int_to_ptr.hbm [resolvable:$true] %s197
          %s199 = sshll.u32 %s191, 4
          %s200 = int_to_ptr.vmem [resolvable:$true] %s199
          %205 = dma.hbm_to_vmem [thread:$0]  %s198, 2048, %s200, %s188, 128, 128, 8
        $region36: #{tpu_custom_call.1} parent=31 // pred_fallthru
          _
      $region32: #{tpu_custom_call.1} parent=5 // pred_fallthru
        _
      %p206 = scmp.le.s32.totalorder 1, %s17
      %p207 = scmp.lt.s32.totalorder %s17, 3
      %p208 = pnand %p206, %p207
      %p209 = pneg %p208
      // Predicated region
      $region37: #{tpu_custom_call.1} parent=5 // pred_check
        _
      $region38: #{tpu_custom_call.1} parent=5 // pred_check_branch
        %211 = sbr.rel (%p208) target = $region40
      $region39: #{tpu_custom_call.1} parent=5 // pred_region
        %s212 = ssub.s32 %s17, 1
        %s213 = sand.u32 %s30, 1
        %s214 = scalar_lea.sflag [#allocation5], %s213
        %s215 = sand.u32 %s30, 1
        %s216 = smul.addr %s215, 128
        %s217 = scalar_lea.vmem [#allocation4], %s216
        // Predicated region
        $region41: #{tpu_custom_call.1} parent=39 // pred_check
          %p218 = pneg %p43
        $region42: #{tpu_custom_call.1} parent=39 // pred_check_branch
          %220 = sbr.rel (%p218) target = $region44
        $region43: #{tpu_custom_call.1} parent=39 // pred_region
          %222 = dma.done %s214, 2048
        $region44: #{tpu_custom_call.1} parent=39 // pred_fallthru
          _
        %s223 = sand.u32 %s30, 1
        %s224 = scalar_lea.sflag [#allocation5], %s223
        %s225 = sand.u32 %s30, 1
        %s226 = smul.addr %s225, 128
        %s227 = scalar_lea.vmem [#allocation4], %s226
        %p228 = pneg %p43
        %p229 = pneg %p40
        %p230 = pneg %p64
        %p231 = pneg %p61
        %p232 = pneg %p85
        %p233 = pneg %p82
        %p234 = pneg %p106
        %p235 = pneg %p103
        %p236 = pneg %p127
        %p237 = pneg %p124
        %p238 = pneg %p153
        %p239 = pneg %p150
        %s240 = sand.u32 %s140, 1
        %s241 = scalar_lea.sflag [#allocation6], %s240
        %s242 = sand.u32 %s140, 1
        %s243 = smul.addr %s242, 64
        %s244 = scalar_lea.vmem [#allocation7], %s243
        %v245 = vld [vmem:[%s217] sm:$0xff]
        %v246 = vld [vmem:[%s217 + $0x8] sm:$0xff]
        %v247 = vld [vmem:[%s217 + $0x10] sm:$0xff]
        %v248 = vld [vmem:[%s217 + $0x18] sm:$0xff]
        %v249 = vld [vmem:[%s217 + $0x20] sm:$0xff]
        %v250 = vld [vmem:[%s217 + $0x28] sm:$0xff]
        %v251 = vld [vmem:[%s217 + $0x30] sm:$0xff]
        %v252 = vld [vmem:[%s217 + $0x38] sm:$0xff]
        %v253 = vld [vmem:[%s217 + $0x40] sm:$0xff]
        %v254 = vld [vmem:[%s217 + $0x48] sm:$0xff]
        %v255 = vld [vmem:[%s217 + $0x50] sm:$0xff]
        %v256 = vld [vmem:[%s217 + $0x58] sm:$0xff]
        %v257 = vld [vmem:[%s217 + $0x60] sm:$0xff]
        %v258 = vld [vmem:[%s217 + $0x68] sm:$0xff]
        %v259 = vld [vmem:[%s217 + $0x70] sm:$0xff]
        %v260 = vld [vmem:[%s217 + $0x78] sm:$0xff]
        %277 = vrot.lane.b32.xlu0 %v245, 120
        %v278 = vpop.permute.xlu0 %277
        %279 = vrot.lane.b32.xlu0 %v246, 120
        %v280 = vpop.permute.xlu0 %279
        %281 = vrot.lane.b32.xlu0 %v247, 120
        %v282 = vpop.permute.xlu0 %281
        %283 = vrot.lane.b32.xlu0 %v248, 120
        %v284 = vpop.permute.xlu0 %283
        %285 = vrot.lane.b32.xlu0 %v249, 120
        %v286 = vpop.permute.xlu0 %285
        %287 = vrot.lane.b32.xlu0 %v250, 120
        %v288 = vpop.permute.xlu0 %287
        %289 = vrot.lane.b32.xlu0 %v251, 120
        %v290 = vpop.permute.xlu0 %289
        %291 = vrot.lane.b32.xlu0 %v252, 120
        %v292 = vpop.permute.xlu0 %291
        %293 = vrot.lane.b32.xlu0 %v253, 120
        %v294 = vpop.permute.xlu0 %293
        %295 = vrot.lane.b32.xlu0 %v254, 120
        %v296 = vpop.permute.xlu0 %295
        %297 = vrot.lane.b32.xlu0 %v255, 120
        %v298 = vpop.permute.xlu0 %297
        %299 = vrot.lane.b32.xlu0 %v256, 120
        %v300 = vpop.permute.xlu0 %299
        %301 = vrot.lane.b32.xlu0 %v257, 120
        %v302 = vpop.permute.xlu0 %301
        %303 = vrot.lane.b32.xlu0 %v258, 120
        %v304 = vpop.permute.xlu0 %303
        %305 = vrot.lane.b32.xlu0 %v259, 120
        %v306 = vpop.permute.xlu0 %305
        %307 = vrot.lane.b32.xlu0 %v260, 120
        %v308 = vpop.permute.xlu0 %307
        %v325 = vmax.f32 %v245, %v278
        %v326 = vmax.f32 %v246, %v280
        %v327 = vmax.f32 %v247, %v282
        %v328 = vmax.f32 %v248, %v284
        %v329 = vmax.f32 %v249, %v286
        %v330 = vmax.f32 %v250, %v288
        %v331 = vmax.f32 %v251, %v290
        %v332 = vmax.f32 %v252, %v292
        %v333 = vmax.f32 %v253, %v294
        %v334 = vmax.f32 %v254, %v296
        %v335 = vmax.f32 %v255, %v298
        %v336 = vmax.f32 %v256, %v300
        %v337 = vmax.f32 %v257, %v302
        %v338 = vmax.f32 %v258, %v304
        %v339 = vmax.f32 %v259, %v306
        %v340 = vmax.f32 %v260, %v308
        %v341 = vmax.f32 %v325, %v326
        %v342 = vmax.f32 %v327, %v328
        %v343 = vmax.f32 %v329, %v330
        %v344 = vmax.f32 %v331, %v332
        %v345 = vmax.f32 %v333, %v334
        %v346 = vmax.f32 %v335, %v336
        %v347 = vmax.f32 %v337, %v338
        %v348 = vmax.f32 %v339, %v340
        %vm349 = vcmask 64512
        %350 = vst.msk [vmem:[#allocation2] sm:$0xff] %vm349, 0.0
        %351 = vst.msk [vmem:[#allocation2 + $0x8] sm:$0xff] %vm349, 0.0
        %vm352 = vcmask 57344
        %353 = vst.msk [vmem:[#allocation2 + $0x10] sm:$0x1] %vm352, 0.0
        %s354 = scalar_lea.vmem [#allocation2], 216
        %355 = vst.msk [vmem:[%s354] sm:$0xff] %vm349, 0.0
        %356 = vst.msk [vmem:[%s354 + $0x8] sm:$0xff] %vm349, 0.0
        %357 = vst.msk [vmem:[%s354 + $0x10] sm:$0x1] %vm352, 0.0
        %358 = vst.msk [vmem:[#allocation2 + $0x7] sm:$0x1] %vm352, 0.0
        %359 = vst.msk [vmem:[#allocation2 + $0x1f] sm:$0x1] %vm352, 0.0
        %360 = vst.msk [vmem:[#allocation2 + $0x37] sm:$0x1] %vm352, 0.0
        %361 = vst.msk [vmem:[#allocation2 + $0x4f] sm:$0x1] %vm352, 0.0
        %362 = vst.msk [vmem:[#allocation2 + $0x67] sm:$0x1] %vm352, 0.0
        %363 = vst.msk [vmem:[#allocation2 + $0x7f] sm:$0x1] %vm352, 0.0
        %364 = vst.msk [vmem:[#allocation2 + $0x97] sm:$0x1] %vm352, 0.0
        %365 = vst.msk [vmem:[#allocation2 + $0xaf] sm:$0x1] %vm352, 0.0
        %366 = vst.msk [vmem:[#allocation2 + $0xc7] sm:$0x1] %vm352, 0.0
        %367 = vst.msk [vmem:[#allocation2 + $0xdf] sm:$0x1] %vm352, 0.0
        %368 = vst.msk [vmem:[#allocation2 + $0x10] sm:$0x1] %vm352, 0.0
        %369 = vst.msk [vmem:[#allocation2 + $0x28] sm:$0x1] %vm352, 0.0
        %370 = vst.msk [vmem:[#allocation2 + $0x40] sm:$0x1] %vm352, 0.0
        %371 = vst.msk [vmem:[#allocation2 + $0x58] sm:$0x1] %vm352, 0.0
        %372 = vst.msk [vmem:[#allocation2 + $0x70] sm:$0x1] %vm352, 0.0
        %373 = vst.msk [vmem:[#allocation2 + $0x88] sm:$0x1] %vm352, 0.0
        %374 = vst.msk [vmem:[#allocation2 + $0xa0] sm:$0x1] %vm352, 0.0
        %375 = vst.msk [vmem:[#allocation2 + $0xb8] sm:$0x1] %vm352, 0.0
        %376 = vst.msk [vmem:[#allocation2 + $0xd0] sm:$0x1] %vm352, 0.0
        %377 = vst.msk [vmem:[#allocation2 + $0xe8] sm:$0x1] %vm352, 0.0
        %378 = vst.msk [vmem:[#allocation3] sm:$0xff] %vm349, 0.0
        %379 = vst.msk [vmem:[#allocation3 + $0x8] sm:$0xff] %vm349, 0.0
        %380 = vst.msk [vmem:[#allocation3 + $0x10] sm:$0x1] %vm352, 0.0
        %s381 = scalar_lea.vmem [#allocation3], 216
        %382 = vst.msk [vmem:[%s381] sm:$0xff] %vm349, 0.0
        %383 = vst.msk [vmem:[%s381 + $0x8] sm:$0xff] %vm349, 0.0
        %384 = vst.msk [vmem:[%s381 + $0x10] sm:$0x1] %vm352, 0.0
        %385 = vst.msk [vmem:[#allocation3 + $0x7] sm:$0x1] %vm352, 0.0
        %386 = vst.msk [vmem:[#allocation3 + $0x1f] sm:$0x1] %vm352, 0.0
        %387 = vst.msk [vmem:[#allocation3 + $0x37] sm:$0x1] %vm352, 0.0
        %388 = vst.msk [vmem:[#allocation3 + $0x4f] sm:$0x1] %vm352, 0.0
        %389 = vst.msk [vmem:[#allocation3 + $0x67] sm:$0x1] %vm352, 0.0
        %390 = vst.msk [vmem:[#allocation3 + $0x7f] sm:$0x1] %vm352, 0.0
        %391 = vst.msk [vmem:[#allocation3 + $0x97] sm:$0x1] %vm352, 0.0
        %392 = vst.msk [vmem:[#allocation3 + $0xaf] sm:$0x1] %vm352, 0.0
        %393 = vst.msk [vmem:[#allocation3 + $0xc7] sm:$0x1] %vm352, 0.0
        %394 = vst.msk [vmem:[#allocation3 + $0xdf] sm:$0x1] %vm352, 0.0
        %395 = vst.msk [vmem:[#allocation3 + $0x10] sm:$0x1] %vm352, 0.0
        %396 = vst.msk [vmem:[#allocation3 + $0x28] sm:$0x1] %vm352, 0.0
        %397 = vst.msk [vmem:[#allocation3 + $0x40] sm:$0x1] %vm352, 0.0
        %398 = vst.msk [vmem:[#allocation3 + $0x58] sm:$0x1] %vm352, 0.0
        %399 = vst.msk [vmem:[#allocation3 + $0x70] sm:$0x1] %vm352, 0.0
        %400 = vst.msk [vmem:[#allocation3 + $0x88] sm:$0x1] %vm352, 0.0
        %401 = vst.msk [vmem:[#allocation3 + $0xa0] sm:$0x1] %vm352, 0.0
        %402 = vst.msk [vmem:[#allocation3 + $0xb8] sm:$0x1] %vm352, 0.0
        %403 = vst.msk [vmem:[#allocation3 + $0xd0] sm:$0x1] %vm352, 0.0
        %404 = vst.msk [vmem:[#allocation3 + $0xe8] sm:$0x1] %vm352, 0.0
        %v405 = vld [vmem:[%s2] sm:$0x1]
        %s406 = scalar_lea.vmem [#allocation2], 24
        %407 = vst.msk [vmem:[%s406 + $0x8] sm:$0xff] %vm349, %v341
        %408 = vst.msk [vmem:[%s406 + $0x20] sm:$0xff] %vm349, %v342
        %409 = vst.msk [vmem:[%s406 + $0x38] sm:$0xff] %vm349, %v343
        %410 = vst.msk [vmem:[%s406 + $0x50] sm:$0xff] %vm349, %v344
        %411 = vst.msk [vmem:[%s406 + $0x68] sm:$0xff] %vm349, %v345
        %412 = vst.msk [vmem:[%s406 + $0x80] sm:$0xff] %vm349, %v346
        %413 = vst.msk [vmem:[%s406 + $0x98] sm:$0xff] %vm349, %v347
        %414 = vst.msk [vmem:[%s406 + $0xb0] sm:$0xff] %vm349, %v348
        %v415 = vld [vmem:[%s1] sm:$0xff]
        %v416 = vld [vmem:[%s1 + $0x8] sm:$0xff]
        %v417 = vld [vmem:[%s1 + $0x10] sm:$0xff]
        %v418 = vld [vmem:[%s1 + $0x18] sm:$0xff]
        %v419 = vld [vmem:[%s1 + $0x20] sm:$0xff]
        %v420 = vld [vmem:[%s1 + $0x28] sm:$0xff]
        %v421 = vld [vmem:[%s1 + $0x30] sm:$0xff]
        %v422 = vld [vmem:[%s1 + $0x38] sm:$0xff]
        %v423 = vld [vmem:[%s1 + $0x40] sm:$0xff]
        %v424 = vld [vmem:[#allocation2 + $0x7] sm:$0xff]
        %v425 = vld [vmem:[#allocation2 + $0x1f] sm:$0xff]
        %v426 = vld [vmem:[#allocation2 + $0x37] sm:$0xff]
        %v427 = vld [vmem:[#allocation2 + $0x4f] sm:$0xff]
        %v428 = vld [vmem:[#allocation2 + $0x67] sm:$0xff]
        %v429 = vld [vmem:[#allocation2 + $0x7f] sm:$0xff]
        %v430 = vld [vmem:[#allocation2 + $0x97] sm:$0xff]
        %v431 = vld [vmem:[#allocation2 + $0xaf] sm:$0xff]
        %v432 = vld [vmem:[#allocation2 + $0xc7] sm:$0xff]
        %v433 = vld [vmem:[#allocation2 + $0xdf] sm:$0xff]
        %v435 = vsel %vm349, %v425, 0
        %v438 = vsel %vm349, %v426, 0
        %v441 = vsel %vm349, %v427, 0
        %v444 = vsel %vm349, %v428, 0
        %v447 = vsel %vm349, %v429, 0
        %v450 = vsel %vm349, %v430, 0
        %v453 = vsel %vm349, %v431, 0
        %v456 = vsel %vm349, %v432, 0
        %458 = vmatpush.msra.mxu0 0.0
        %459 = vmatpush.msra.mxu0 0.0
        %460 = vmatpush.msra.mxu0 0.0
        %461 = vmatpush.msra.mxu0 0.0
        %462 = vmatpush.msra.mxu0 0.0
        %463 = vmatpush.msra.mxu0 0.0
        %464 = vmatpush.msra.mxu0 0.0
        %465 = vmatpush.msra.mxu0 0.0
        %466 = vmatpush.msra.mxu0 0.0
        %467 = vmatpush.msra.mxu0 0.0
        %468 = vmatpush.msra.mxu0 0.0
        %469 = vmatpush.msra.mxu0 0.0
        %470 = vmatpush.msra.mxu0 0.0
        %471 = vmatpush.msra.mxu0 0.0
        %472 = vmatpush.msra.mxu0 0.0
        %473 = vmatpush.msra.mxu0 %v418
        %474 = vmatmul.f32.gmra.mxu0 %v435
        %v475 = vpop.f32.mrf.mxu0
        %v476 = vadd.f32 0.0, %v475
        %477 = vmatmul.f32.gmra.mxu0 %v438
        %v478 = vpop.f32.mrf.mxu0
        %v479 = vadd.f32 0.0, %v478
        %480 = vmatmul.f32.gmra.mxu0 %v441
        %v481 = vpop.f32.mrf.mxu0
        %v482 = vadd.f32 0.0, %v481
        %483 = vmatmul.f32.gmra.mxu0 %v444
        %v484 = vpop.f32.mrf.mxu0
        %v485 = vadd.f32 0.0, %v484
        %486 = vmatmul.f32.gmra.mxu0 %v447
        %v487 = vpop.f32.mrf.mxu0
        %v488 = vadd.f32 0.0, %v487
        %489 = vmatmul.f32.gmra.mxu0 %v450
        %v490 = vpop.f32.mrf.mxu0
        %v491 = vadd.f32 0.0, %v490
        %492 = vmatmul.f32.gmra.mxu0 %v453
        %v493 = vpop.f32.mrf.mxu0
        %v494 = vadd.f32 0.0, %v493
        %495 = vmatmul.f32.gmra.mxu0 %v456
        %v496 = vpop.f32.mrf.mxu0
        %v497 = vadd.f32 0.0, %v496
        %498 = vdwg.mxu0
        %v500 = vsel %vm349, %v424, 0
        %502 = vmatpush.msra.mxu0 0.0
        %503 = vmatpush.msra.mxu0 0.0
        %504 = vmatpush.msra.mxu0 0.0
        %505 = vmatpush.msra.mxu0 0.0
        %506 = vmatpush.msra.mxu0 0.0
        %507 = vmatpush.msra.mxu0 0.0
        %508 = vmatpush.msra.mxu0 0.0
        %509 = vmatpush.msra.mxu0 0.0
        %510 = vmatpush.msra.mxu0 0.0
        %511 = vmatpush.msra.mxu0 0.0
        %512 = vmatpush.msra.mxu0 0.0
        %513 = vmatpush.msra.mxu0 0.0
        %514 = vmatpush.msra.mxu0 0.0
        %515 = vmatpush.msra.mxu0 0.0
        %516 = vmatpush.msra.mxu0 0.0
        %517 = vmatpush.msra.mxu0 %v415
        %518 = vmatmul.f32.gmra.mxu0 %v500
        %v519 = vpop.f32.mrf.mxu0
        %v520 = vadd.f32 %v476, %v519
        %521 = vmatmul.f32.gmra.mxu0 %v435
        %v522 = vpop.f32.mrf.mxu0
        %v523 = vadd.f32 %v479, %v522
        %524 = vmatmul.f32.gmra.mxu0 %v438
        %v525 = vpop.f32.mrf.mxu0
        %v526 = vadd.f32 %v482, %v525
        %527 = vmatmul.f32.gmra.mxu0 %v441
        %v528 = vpop.f32.mrf.mxu0
        %v529 = vadd.f32 %v485, %v528
        %530 = vmatmul.f32.gmra.mxu0 %v444
        %v531 = vpop.f32.mrf.mxu0
        %v532 = vadd.f32 %v488, %v531
        %533 = vmatmul.f32.gmra.mxu0 %v447
        %v534 = vpop.f32.mrf.mxu0
        %v535 = vadd.f32 %v491, %v534
        %536 = vmatmul.f32.gmra.mxu0 %v450
        %v537 = vpop.f32.mrf.mxu0
        %v538 = vadd.f32 %v494, %v537
        %539 = vmatmul.f32.gmra.mxu0 %v453
        %v540 = vpop.f32.mrf.mxu0
        %v541 = vadd.f32 %v497, %v540
        %542 = vdwg.mxu0
        %v544 = vsel %vm349, %v433, 0
        %546 = vmatpush.msra.mxu0 0.0
        %547 = vmatpush.msra.mxu0 0.0
        %548 = vmatpush.msra.mxu0 0.0
        %549 = vmatpush.msra.mxu0 0.0
        %550 = vmatpush.msra.mxu0 0.0
        %551 = vmatpush.msra.mxu0 0.0
        %552 = vmatpush.msra.mxu0 0.0
        %553 = vmatpush.msra.mxu0 0.0
        %554 = vmatpush.msra.mxu0 0.0
        %555 = vmatpush.msra.mxu0 0.0
        %556 = vmatpush.msra.mxu0 0.0
        %557 = vmatpush.msra.mxu0 0.0
        %558 = vmatpush.msra.mxu0 0.0
        %559 = vmatpush.msra.mxu0 0.0
        %560 = vmatpush.msra.mxu0 0.0
        %561 = vmatpush.msra.mxu0 %v421
        %562 = vmatmul.f32.gmra.mxu0 %v438
        %v563 = vpop.f32.mrf.mxu0
        %v564 = vadd.f32 0.0, %v563
        %565 = vmatmul.f32.gmra.mxu0 %v441
        %v566 = vpop.f32.mrf.mxu0
        %v567 = vadd.f32 0.0, %v566
        %568 = vmatmul.f32.gmra.mxu0 %v444
        %v569 = vpop.f32.mrf.mxu0
        %v570 = vadd.f32 0.0, %v569
        %571 = vmatmul.f32.gmra.mxu0 %v447
        %v572 = vpop.f32.mrf.mxu0
        %v573 = vadd.f32 0.0, %v572
        %574 = vmatmul.f32.gmra.mxu0 %v450
        %v575 = vpop.f32.mrf.mxu0
        %v576 = vadd.f32 0.0, %v575
        %577 = vmatmul.f32.gmra.mxu0 %v453
        %v578 = vpop.f32.mrf.mxu0
        %v579 = vadd.f32 0.0, %v578
        %580 = vmatmul.f32.gmra.mxu0 %v456
        %v581 = vpop.f32.mrf.mxu0
        %v582 = vadd.f32 0.0, %v581
        %583 = vmatmul.f32.gmra.mxu0 %v544
        %v584 = vpop.f32.mrf.mxu0
        %v585 = vadd.f32 0.0, %v584
        %586 = vdwg.mxu0
        %v587 = vadd.f32 %v520, %v564
        %v588 = vadd.f32 %v523, %v567
        %v589 = vadd.f32 %v526, %v570
        %v590 = vadd.f32 %v529, %v573
        %v591 = vadd.f32 %v532, %v576
        %v592 = vadd.f32 %v535, %v579
        %v593 = vadd.f32 %v538, %v582
        %v594 = vadd.f32 %v541, %v585
        %v595 = vld [vmem:[#allocation2 + $0x8] sm:$0xff]
        %v596 = vld [vmem:[#allocation2 + $0x20] sm:$0xff]
        %v597 = vld [vmem:[#allocation2 + $0x38] sm:$0xff]
        %v598 = vld [vmem:[#allocation2 + $0x50] sm:$0xff]
        %v599 = vld [vmem:[#allocation2 + $0x68] sm:$0xff]
        %v600 = vld [vmem:[#allocation2 + $0x80] sm:$0xff]
        %v601 = vld [vmem:[#allocation2 + $0x98] sm:$0xff]
        %v602 = vld [vmem:[#allocation2 + $0xb0] sm:$0xff]
        %v603 = vld [vmem:[#allocation2 + $0xc8] sm:$0xff]
        %v604 = vld [vmem:[#allocation2 + $0xe0] sm:$0xff]
        %v606 = vsel %vm349, %v595, 0
        %v609 = vsel %vm349, %v596, 0
        %v612 = vsel %vm349, %v597, 0
        %v615 = vsel %vm349, %v598, 0
        %v618 = vsel %vm349, %v599, 0
        %v621 = vsel %vm349, %v600, 0
        %v624 = vsel %vm349, %v601, 0
        %v627 = vsel %vm349, %v602, 0
        %629 = vmatpush.msra.mxu0 0.0
        %630 = vmatpush.msra.mxu0 0.0
        %631 = vmatpush.msra.mxu0 0.0
        %632 = vmatpush.msra.mxu0 0.0
        %633 = vmatpush.msra.mxu0 0.0
        %634 = vmatpush.msra.mxu0 0.0
        %635 = vmatpush.msra.mxu0 0.0
        %636 = vmatpush.msra.mxu0 0.0
        %637 = vmatpush.msra.mxu0 0.0
        %638 = vmatpush.msra.mxu0 0.0
        %639 = vmatpush.msra.mxu0 0.0
        %640 = vmatpush.msra.mxu0 0.0
        %641 = vmatpush.msra.mxu0 0.0
        %642 = vmatpush.msra.mxu0 0.0
        %643 = vmatpush.msra.mxu0 0.0
        %644 = vmatpush.msra.mxu0 %v416
        %645 = vmatmul.f32.gmra.mxu0 %v606
        %v646 = vpop.f32.mrf.mxu0
        %v647 = vadd.f32 0.0, %v646
        %648 = vmatmul.f32.gmra.mxu0 %v609
        %v649 = vpop.f32.mrf.mxu0
        %v650 = vadd.f32 0.0, %v649
        %651 = vmatmul.f32.gmra.mxu0 %v612
        %v652 = vpop.f32.mrf.mxu0
        %v653 = vadd.f32 0.0, %v652
        %654 = vmatmul.f32.gmra.mxu0 %v615
        %v655 = vpop.f32.mrf.mxu0
        %v656 = vadd.f32 0.0, %v655
        %657 = vmatmul.f32.gmra.mxu0 %v618
        %v658 = vpop.f32.mrf.mxu0
        %v659 = vadd.f32 0.0, %v658
        %660 = vmatmul.f32.gmra.mxu0 %v621
        %v661 = vpop.f32.mrf.mxu0
        %v662 = vadd.f32 0.0, %v661
        %663 = vmatmul.f32.gmra.mxu0 %v624
        %v664 = vpop.f32.mrf.mxu0
        %v665 = vadd.f32 0.0, %v664
        %666 = vmatmul.f32.gmra.mxu0 %v627
        %v667 = vpop.f32.mrf.mxu0
        %v668 = vadd.f32 0.0, %v667
        %669 = vdwg.mxu0
        %v670 = vadd.f32 %v587, %v647
        %v671 = vadd.f32 %v588, %v650
        %v672 = vadd.f32 %v589, %v653
        %v673 = vadd.f32 %v590, %v656
        %v674 = vadd.f32 %v591, %v659
        %v675 = vadd.f32 %v592, %v662
        %v676 = vadd.f32 %v593, %v665
        %v677 = vadd.f32 %v594, %v668
        %v679 = vsel %vm349, %v603, 0
        %681 = vmatpush.msra.mxu0 0.0
        %682 = vmatpush.msra.mxu0 0.0
        %683 = vmatpush.msra.mxu0 0.0
        %684 = vmatpush.msra.mxu0 0.0
        %685 = vmatpush.msra.mxu0 0.0
        %686 = vmatpush.msra.mxu0 0.0
        %687 = vmatpush.msra.mxu0 0.0
        %688 = vmatpush.msra.mxu0 0.0
        %689 = vmatpush.msra.mxu0 0.0
        %690 = vmatpush.msra.mxu0 0.0
        %691 = vmatpush.msra.mxu0 0.0
        %692 = vmatpush.msra.mxu0 0.0
        %693 = vmatpush.msra.mxu0 0.0
        %694 = vmatpush.msra.mxu0 0.0
        %695 = vmatpush.msra.mxu0 0.0
        %696 = vmatpush.msra.mxu0 %v419
        %697 = vmatmul.f32.gmra.mxu0 %v609
        %v698 = vpop.f32.mrf.mxu0
        %v699 = vadd.f32 0.0, %v698
        %700 = vmatmul.f32.gmra.mxu0 %v612
        %v701 = vpop.f32.mrf.mxu0
        %v702 = vadd.f32 0.0, %v701
        %703 = vmatmul.f32.gmra.mxu0 %v615
        %v704 = vpop.f32.mrf.mxu0
        %v705 = vadd.f32 0.0, %v704
        %706 = vmatmul.f32.gmra.mxu0 %v618
        %v707 = vpop.f32.mrf.mxu0
        %v708 = vadd.f32 0.0, %v707
        %709 = vmatmul.f32.gmra.mxu0 %v621
        %v710 = vpop.f32.mrf.mxu0
        %v711 = vadd.f32 0.0, %v710
        %712 = vmatmul.f32.gmra.mxu0 %v624
        %v713 = vpop.f32.mrf.mxu0
        %v714 = vadd.f32 0.0, %v713
        %715 = vmatmul.f32.gmra.mxu0 %v627
        %v716 = vpop.f32.mrf.mxu0
        %v717 = vadd.f32 0.0, %v716
        %718 = vmatmul.f32.gmra.mxu0 %v679
        %v719 = vpop.f32.mrf.mxu0
        %v720 = vadd.f32 0.0, %v719
        %721 = vdwg.mxu0
        %v722 = vadd.f32 %v670, %v699
        %v723 = vadd.f32 %v671, %v702
        %v724 = vadd.f32 %v672, %v705
        %v725 = vadd.f32 %v673, %v708
        %v726 = vadd.f32 %v674, %v711
        %v727 = vadd.f32 %v675, %v714
        %v728 = vadd.f32 %v676, %v717
        %v729 = vadd.f32 %v677, %v720
        %v731 = vsel %vm349, %v604, 0
        %733 = vmatpush.msra.mxu0 0.0
        %734 = vmatpush.msra.mxu0 0.0
        %735 = vmatpush.msra.mxu0 0.0
        %736 = vmatpush.msra.mxu0 0.0
        %737 = vmatpush.msra.mxu0 0.0
        %738 = vmatpush.msra.mxu0 0.0
        %739 = vmatpush.msra.mxu0 0.0
        %740 = vmatpush.msra.mxu0 0.0
        %741 = vmatpush.msra.mxu0 0.0
        %742 = vmatpush.msra.mxu0 0.0
        %743 = vmatpush.msra.mxu0 0.0
        %744 = vmatpush.msra.mxu0 0.0
        %745 = vmatpush.msra.mxu0 0.0
        %746 = vmatpush.msra.mxu0 0.0
        %747 = vmatpush.msra.mxu0 0.0
        %748 = vmatpush.msra.mxu0 %v422
        %749 = vmatmul.f32.gmra.mxu0 %v612
        %v750 = vpop.f32.mrf.mxu0
        %v751 = vadd.f32 0.0, %v750
        %752 = vmatmul.f32.gmra.mxu0 %v615
        %v753 = vpop.f32.mrf.mxu0
        %v754 = vadd.f32 0.0, %v753
        %755 = vmatmul.f32.gmra.mxu0 %v618
        %v756 = vpop.f32.mrf.mxu0
        %v757 = vadd.f32 0.0, %v756
        %758 = vmatmul.f32.gmra.mxu0 %v621
        %v759 = vpop.f32.mrf.mxu0
        %v760 = vadd.f32 0.0, %v759
        %761 = vmatmul.f32.gmra.mxu0 %v624
        %v762 = vpop.f32.mrf.mxu0
        %v763 = vadd.f32 0.0, %v762
        %764 = vmatmul.f32.gmra.mxu0 %v627
        %v765 = vpop.f32.mrf.mxu0
        %v766 = vadd.f32 0.0, %v765
        %767 = vmatmul.f32.gmra.mxu0 %v679
        %v768 = vpop.f32.mrf.mxu0
        %v769 = vadd.f32 0.0, %v768
        %770 = vmatmul.f32.gmra.mxu0 %v731
        %v771 = vpop.f32.mrf.mxu0
        %v772 = vadd.f32 0.0, %v771
        %773 = vdwg.mxu0
        %v774 = vadd.f32 %v722, %v751
        %v775 = vadd.f32 %v723, %v754
        %v776 = vadd.f32 %v724, %v757
        %v777 = vadd.f32 %v725, %v760
        %v778 = vadd.f32 %v726, %v763
        %v779 = vadd.f32 %v727, %v766
        %v780 = vadd.f32 %v728, %v769
        %v781 = vadd.f32 %v729, %v772
        %v782 = vld [vmem:[#allocation2 + $0x9] sm:$0xff]
        %v783 = vld [vmem:[#allocation2 + $0x21] sm:$0xff]
        %v784 = vld [vmem:[#allocation2 + $0x39] sm:$0xff]
        %v785 = vld [vmem:[#allocation2 + $0x51] sm:$0xff]
        %v786 = vld [vmem:[#allocation2 + $0x69] sm:$0xff]
        %v787 = vld [vmem:[#allocation2 + $0x81] sm:$0xff]
        %v788 = vld [vmem:[#allocation2 + $0x99] sm:$0xff]
        %v789 = vld [vmem:[#allocation2 + $0xb1] sm:$0xff]
        %v790 = vld [vmem:[#allocation2 + $0xc9] sm:$0xff]
        %v791 = vld [vmem:[#allocation2 + $0xe1] sm:$0xff]
        %v793 = vsel %vm349, %v782, 0
        %v796 = vsel %vm349, %v783, 0
        %v799 = vsel %vm349, %v784, 0
        %v802 = vsel %vm349, %v785, 0
        %v805 = vsel %vm349, %v786, 0
        %v808 = vsel %vm349, %v787, 0
        %v811 = vsel %vm349, %v788, 0
        %v814 = vsel %vm349, %v789, 0
        %816 = vmatpush.msra.mxu0 0.0
        %817 = vmatpush.msra.mxu0 0.0
        %818 = vmatpush.msra.mxu0 0.0
        %819 = vmatpush.msra.mxu0 0.0
        %820 = vmatpush.msra.mxu0 0.0
        %821 = vmatpush.msra.mxu0 0.0
        %822 = vmatpush.msra.mxu0 0.0
        %823 = vmatpush.msra.mxu0 0.0
        %824 = vmatpush.msra.mxu0 0.0
        %825 = vmatpush.msra.mxu0 0.0
        %826 = vmatpush.msra.mxu0 0.0
        %827 = vmatpush.msra.mxu0 0.0
        %828 = vmatpush.msra.mxu0 0.0
        %829 = vmatpush.msra.mxu0 0.0
        %830 = vmatpush.msra.mxu0 0.0
        %831 = vmatpush.msra.mxu0 %v417
        %832 = vmatmul.f32.gmra.mxu0 %v793
        %v833 = vpop.f32.mrf.mxu0
        %v834 = vadd.f32 0.0, %v833
        %835 = vmatmul.f32.gmra.mxu0 %v796
        %v836 = vpop.f32.mrf.mxu0
        %v837 = vadd.f32 0.0, %v836
        %838 = vmatmul.f32.gmra.mxu0 %v799
        %v839 = vpop.f32.mrf.mxu0
        %v840 = vadd.f32 0.0, %v839
        %841 = vmatmul.f32.gmra.mxu0 %v802
        %v842 = vpop.f32.mrf.mxu0
        %v843 = vadd.f32 0.0, %v842
        %844 = vmatmul.f32.gmra.mxu0 %v805
        %v845 = vpop.f32.mrf.mxu0
        %v846 = vadd.f32 0.0, %v845
        %847 = vmatmul.f32.gmra.mxu0 %v808
        %v848 = vpop.f32.mrf.mxu0
        %v849 = vadd.f32 0.0, %v848
        %850 = vmatmul.f32.gmra.mxu0 %v811
        %v851 = vpop.f32.mrf.mxu0
        %v852 = vadd.f32 0.0, %v851
        %853 = vmatmul.f32.gmra.mxu0 %v814
        %v854 = vpop.f32.mrf.mxu0
        %v855 = vadd.f32 0.0, %v854
        %856 = vdwg.mxu0
        %v857 = vadd.f32 %v774, %v834
        %v858 = vadd.f32 %v775, %v837
        %v859 = vadd.f32 %v776, %v840
        %v860 = vadd.f32 %v777, %v843
        %v861 = vadd.f32 %v778, %v846
        %v862 = vadd.f32 %v779, %v849
        %v863 = vadd.f32 %v780, %v852
        %v864 = vadd.f32 %v781, %v855
        %v866 = vsel %vm349, %v790, 0
        %868 = vmatpush.msra.mxu0 0.0
        %869 = vmatpush.msra.mxu0 0.0
        %870 = vmatpush.msra.mxu0 0.0
        %871 = vmatpush.msra.mxu0 0.0
        %872 = vmatpush.msra.mxu0 0.0
        %873 = vmatpush.msra.mxu0 0.0
        %874 = vmatpush.msra.mxu0 0.0
        %875 = vmatpush.msra.mxu0 0.0
        %876 = vmatpush.msra.mxu0 0.0
        %877 = vmatpush.msra.mxu0 0.0
        %878 = vmatpush.msra.mxu0 0.0
        %879 = vmatpush.msra.mxu0 0.0
        %880 = vmatpush.msra.mxu0 0.0
        %881 = vmatpush.msra.mxu0 0.0
        %882 = vmatpush.msra.mxu0 0.0
        %883 = vmatpush.msra.mxu0 %v420
        %884 = vmatmul.f32.gmra.mxu0 %v796
        %v885 = vpop.f32.mrf.mxu0
        %v886 = vadd.f32 0.0, %v885
        %887 = vmatmul.f32.gmra.mxu0 %v799
        %v888 = vpop.f32.mrf.mxu0
        %v889 = vadd.f32 0.0, %v888
        %890 = vmatmul.f32.gmra.mxu0 %v802
        %v891 = vpop.f32.mrf.mxu0
        %v892 = vadd.f32 0.0, %v891
        %893 = vmatmul.f32.gmra.mxu0 %v805
        %v894 = vpop.f32.mrf.mxu0
        %v895 = vadd.f32 0.0, %v894
        %896 = vmatmul.f32.gmra.mxu0 %v808
        %v897 = vpop.f32.mrf.mxu0
        %v898 = vadd.f32 0.0, %v897
        %899 = vmatmul.f32.gmra.mxu0 %v811
        %v900 = vpop.f32.mrf.mxu0
        %v901 = vadd.f32 0.0, %v900
        %902 = vmatmul.f32.gmra.mxu0 %v814
        %v903 = vpop.f32.mrf.mxu0
        %v904 = vadd.f32 0.0, %v903
        %905 = vmatmul.f32.gmra.mxu0 %v866
        %v906 = vpop.f32.mrf.mxu0
        %v907 = vadd.f32 0.0, %v906
        %908 = vdwg.mxu0
        %v909 = vadd.f32 %v857, %v886
        %v910 = vadd.f32 %v858, %v889
        %v911 = vadd.f32 %v859, %v892
        %v912 = vadd.f32 %v860, %v895
        %v913 = vadd.f32 %v861, %v898
        %v914 = vadd.f32 %v862, %v901
        %v915 = vadd.f32 %v863, %v904
        %v916 = vadd.f32 %v864, %v907
        %v918 = vsel %vm349, %v791, 0
        %920 = vmatpush.msra.mxu0 0.0
        %921 = vmatpush.msra.mxu0 0.0
        %922 = vmatpush.msra.mxu0 0.0
        %923 = vmatpush.msra.mxu0 0.0
        %924 = vmatpush.msra.mxu0 0.0
        %925 = vmatpush.msra.mxu0 0.0
        %926 = vmatpush.msra.mxu0 0.0
        %927 = vmatpush.msra.mxu0 0.0
        %928 = vmatpush.msra.mxu0 0.0
        %929 = vmatpush.msra.mxu0 0.0
        %930 = vmatpush.msra.mxu0 0.0
        %931 = vmatpush.msra.mxu0 0.0
        %932 = vmatpush.msra.mxu0 0.0
        %933 = vmatpush.msra.mxu0 0.0
        %934 = vmatpush.msra.mxu0 0.0
        %935 = vmatpush.msra.mxu0 %v423
        %936 = vmatmul.f32.gmra.mxu0 %v799
        %v937 = vpop.f32.mrf.mxu0
        %v938 = vadd.f32 0.0, %v937
        %939 = vmatmul.f32.gmra.mxu0 %v802
        %v940 = vpop.f32.mrf.mxu0
        %v941 = vadd.f32 0.0, %v940
        %942 = vmatmul.f32.gmra.mxu0 %v805
        %v943 = vpop.f32.mrf.mxu0
        %v944 = vadd.f32 0.0, %v943
        %945 = vmatmul.f32.gmra.mxu0 %v808
        %v946 = vpop.f32.mrf.mxu0
        %v947 = vadd.f32 0.0, %v946
        %948 = vmatmul.f32.gmra.mxu0 %v811
        %v949 = vpop.f32.mrf.mxu0
        %v950 = vadd.f32 0.0, %v949
        %951 = vmatmul.f32.gmra.mxu0 %v814
        %v952 = vpop.f32.mrf.mxu0
        %v953 = vadd.f32 0.0, %v952
        %954 = vmatmul.f32.gmra.mxu0 %v866
        %v955 = vpop.f32.mrf.mxu0
        %v956 = vadd.f32 0.0, %v955
        %957 = vmatmul.f32.gmra.mxu0 %v918
        %v958 = vpop.f32.mrf.mxu0
        %v959 = vadd.f32 0.0, %v958
        %960 = vdwg.mxu0
        %v961 = vadd.f32 %v909, %v938
        %v962 = vadd.f32 %v910, %v941
        %v963 = vadd.f32 %v911, %v944
        %v964 = vadd.f32 %v912, %v947
        %v965 = vadd.f32 %v913, %v950
        %v966 = vadd.f32 %v914, %v953
        %v967 = vadd.f32 %v915, %v956
        %v968 = vadd.f32 %v916, %v959
        %v970 = vperm.slane %v405, 0
        %v972 = vadd.f32 %v961, %v970
        %v973 = vadd.f32 %v962, %v970
        %v974 = vadd.f32 %v963, %v970
        %v975 = vadd.f32 %v964, %v970
        %v976 = vadd.f32 %v965, %v970
        %v977 = vadd.f32 %v966, %v970
        %v978 = vadd.f32 %v967, %v970
        %v979 = vadd.f32 %v968, %v970
        %v980 = vmax.f32 %v972, 0.0
        %v981 = vmax.f32 %v973, 0.0
        %v982 = vmax.f32 %v974, 0.0
        %v983 = vmax.f32 %v975, 0.0
        %v984 = vmax.f32 %v976, 0.0
        %v985 = vmax.f32 %v977, 0.0
        %v986 = vmax.f32 %v978, 0.0
        %v987 = vmax.f32 %v979, 0.0
        %v988 = vld [vmem:[%s4] sm:$0x1]
        %s989 = scalar_lea.vmem [#allocation3], 24
        %990 = vst.msk [vmem:[%s989 + $0x8] sm:$0xff] %vm349, %v980
        %991 = vst.msk [vmem:[%s989 + $0x20] sm:$0xff] %vm349, %v981
        %992 = vst.msk [vmem:[%s989 + $0x38] sm:$0xff] %vm349, %v982
        %993 = vst.msk [vmem:[%s989 + $0x50] sm:$0xff] %vm349, %v983
        %994 = vst.msk [vmem:[%s989 + $0x68] sm:$0xff] %vm349, %v984
        %995 = vst.msk [vmem:[%s989 + $0x80] sm:$0xff] %vm349, %v985
        %996 = vst.msk [vmem:[%s989 + $0x98] sm:$0xff] %vm349, %v986
        %997 = vst.msk [vmem:[%s989 + $0xb0] sm:$0xff] %vm349, %v987
        %v998 = vld [vmem:[%s3] sm:$0xff]
        %v999 = vld [vmem:[%s3 + $0x8] sm:$0xff]
        %v1000 = vld [vmem:[%s3 + $0x10] sm:$0xff]
        %v1001 = vld [vmem:[%s3 + $0x18] sm:$0xff]
        %v1002 = vld [vmem:[%s3 + $0x20] sm:$0xff]
        %v1003 = vld [vmem:[%s3 + $0x28] sm:$0xff]
        %v1004 = vld [vmem:[%s3 + $0x30] sm:$0xff]
        %v1005 = vld [vmem:[%s3 + $0x38] sm:$0xff]
        %v1006 = vld [vmem:[%s3 + $0x40] sm:$0xff]
        %v1007 = vld [vmem:[#allocation3 + $0x7] sm:$0xff]
        %v1008 = vld [vmem:[#allocation3 + $0x1f] sm:$0xff]
        %v1009 = vld [vmem:[#allocation3 + $0x37] sm:$0xff]
        %v1010 = vld [vmem:[#allocation3 + $0x4f] sm:$0xff]
        %v1011 = vld [vmem:[#allocation3 + $0x67] sm:$0xff]
        %v1012 = vld [vmem:[#allocation3 + $0x7f] sm:$0xff]
        %v1013 = vld [vmem:[#allocation3 + $0x97] sm:$0xff]
        %v1014 = vld [vmem:[#allocation3 + $0xaf] sm:$0xff]
        %v1015 = vld [vmem:[#allocation3 + $0xc7] sm:$0xff]
        %v1016 = vld [vmem:[#allocation3 + $0xdf] sm:$0xff]
        %v1018 = vsel %vm349, %v1008, 0
        %v1021 = vsel %vm349, %v1009, 0
        %v1024 = vsel %vm349, %v1010, 0
        %v1027 = vsel %vm349, %v1011, 0
        %v1030 = vsel %vm349, %v1012, 0
        %v1033 = vsel %vm349, %v1013, 0
        %v1036 = vsel %vm349, %v1014, 0
        %v1039 = vsel %vm349, %v1015, 0
        %1041 = vmatpush.msra.mxu0 0.0
        %1042 = vmatpush.msra.mxu0 0.0
        %1043 = vmatpush.msra.mxu0 0.0
        %1044 = vmatpush.msra.mxu0 0.0
        %1045 = vmatpush.msra.mxu0 0.0
        %1046 = vmatpush.msra.mxu0 0.0
        %1047 = vmatpush.msra.mxu0 0.0
        %1048 = vmatpush.msra.mxu0 0.0
        %1049 = vmatpush.msra.mxu0 0.0
        %1050 = vmatpush.msra.mxu0 0.0
        %1051 = vmatpush.msra.mxu0 0.0
        %1052 = vmatpush.msra.mxu0 0.0
        %1053 = vmatpush.msra.mxu0 0.0
        %1054 = vmatpush.msra.mxu0 0.0
        %1055 = vmatpush.msra.mxu0 0.0
        %1056 = vmatpush.msra.mxu0 %v1001
        %1057 = vmatmul.f32.gmra.mxu0 %v1018
        %v1058 = vpop.f32.mrf.mxu0
        %v1059 = vadd.f32 0.0, %v1058
        %1060 = vmatmul.f32.gmra.mxu0 %v1021
        %v1061 = vpop.f32.mrf.mxu0
        %v1062 = vadd.f32 0.0, %v1061
        %1063 = vmatmul.f32.gmra.mxu0 %v1024
        %v1064 = vpop.f32.mrf.mxu0
        %v1065 = vadd.f32 0.0, %v1064
        %1066 = vmatmul.f32.gmra.mxu0 %v1027
        %v1067 = vpop.f32.mrf.mxu0
        %v1068 = vadd.f32 0.0, %v1067
        %1069 = vmatmul.f32.gmra.mxu0 %v1030
        %v1070 = vpop.f32.mrf.mxu0
        %v1071 = vadd.f32 0.0, %v1070
        %1072 = vmatmul.f32.gmra.mxu0 %v1033
        %v1073 = vpop.f32.mrf.mxu0
        %v1074 = vadd.f32 0.0, %v1073
        %1075 = vmatmul.f32.gmra.mxu0 %v1036
        %v1076 = vpop.f32.mrf.mxu0
        %v1077 = vadd.f32 0.0, %v1076
        %1078 = vmatmul.f32.gmra.mxu0 %v1039
        %v1079 = vpop.f32.mrf.mxu0
        %v1080 = vadd.f32 0.0, %v1079
        %1081 = vdwg.mxu0
        %v1083 = vsel %vm349, %v1007, 0
        %1085 = vmatpush.msra.mxu0 0.0
        %1086 = vmatpush.msra.mxu0 0.0
        %1087 = vmatpush.msra.mxu0 0.0
        %1088 = vmatpush.msra.mxu0 0.0
        %1089 = vmatpush.msra.mxu0 0.0
        %1090 = vmatpush.msra.mxu0 0.0
        %1091 = vmatpush.msra.mxu0 0.0
        %1092 = vmatpush.msra.mxu0 0.0
        %1093 = vmatpush.msra.mxu0 0.0
        %1094 = vmatpush.msra.mxu0 0.0
        %1095 = vmatpush.msra.mxu0 0.0
        %1096 = vmatpush.msra.mxu0 0.0
        %1097 = vmatpush.msra.mxu0 0.0
        %1098 = vmatpush.msra.mxu0 0.0
        %1099 = vmatpush.msra.mxu0 0.0
        %1100 = vmatpush.msra.mxu0 %v998
        %1101 = vmatmul.f32.gmra.mxu0 %v1083
        %v1102 = vpop.f32.mrf.mxu0
        %v1103 = vadd.f32 %v1059, %v1102
        %1104 = vmatmul.f32.gmra.mxu0 %v1018
        %v1105 = vpop.f32.mrf.mxu0
        %v1106 = vadd.f32 %v1062, %v1105
        %1107 = vmatmul.f32.gmra.mxu0 %v1021
        %v1108 = vpop.f32.mrf.mxu0
        %v1109 = vadd.f32 %v1065, %v1108
        %1110 = vmatmul.f32.gmra.mxu0 %v1024
        %v1111 = vpop.f32.mrf.mxu0
        %v1112 = vadd.f32 %v1068, %v1111
        %1113 = vmatmul.f32.gmra.mxu0 %v1027
        %v1114 = vpop.f32.mrf.mxu0
        %v1115 = vadd.f32 %v1071, %v1114
        %1116 = vmatmul.f32.gmra.mxu0 %v1030
        %v1117 = vpop.f32.mrf.mxu0
        %v1118 = vadd.f32 %v1074, %v1117
        %1119 = vmatmul.f32.gmra.mxu0 %v1033
        %v1120 = vpop.f32.mrf.mxu0
        %v1121 = vadd.f32 %v1077, %v1120
        %1122 = vmatmul.f32.gmra.mxu0 %v1036
        %v1123 = vpop.f32.mrf.mxu0
        %v1124 = vadd.f32 %v1080, %v1123
        %1125 = vdwg.mxu0
        %v1127 = vsel %vm349, %v1016, 0
        %1129 = vmatpush.msra.mxu0 0.0
        %1130 = vmatpush.msra.mxu0 0.0
        %1131 = vmatpush.msra.mxu0 0.0
        %1132 = vmatpush.msra.mxu0 0.0
        %1133 = vmatpush.msra.mxu0 0.0
        %1134 = vmatpush.msra.mxu0 0.0
        %1135 = vmatpush.msra.mxu0 0.0
        %1136 = vmatpush.msra.mxu0 0.0
        %1137 = vmatpush.msra.mxu0 0.0
        %1138 = vmatpush.msra.mxu0 0.0
        %1139 = vmatpush.msra.mxu0 0.0
        %1140 = vmatpush.msra.mxu0 0.0
        %1141 = vmatpush.msra.mxu0 0.0
        %1142 = vmatpush.msra.mxu0 0.0
        %1143 = vmatpush.msra.mxu0 0.0
        %1144 = vmatpush.msra.mxu0 %v1004
        %1145 = vmatmul.f32.gmra.mxu0 %v1021
        %v1146 = vpop.f32.mrf.mxu0
        %v1147 = vadd.f32 0.0, %v1146
        %1148 = vmatmul.f32.gmra.mxu0 %v1024
        %v1149 = vpop.f32.mrf.mxu0
        %v1150 = vadd.f32 0.0, %v1149
        %1151 = vmatmul.f32.gmra.mxu0 %v1027
        %v1152 = vpop.f32.mrf.mxu0
        %v1153 = vadd.f32 0.0, %v1152
        %1154 = vmatmul.f32.gmra.mxu0 %v1030
        %v1155 = vpop.f32.mrf.mxu0
        %v1156 = vadd.f32 0.0, %v1155
        %1157 = vmatmul.f32.gmra.mxu0 %v1033
        %v1158 = vpop.f32.mrf.mxu0
        %v1159 = vadd.f32 0.0, %v1158
        %1160 = vmatmul.f32.gmra.mxu0 %v1036
        %v1161 = vpop.f32.mrf.mxu0
        %v1162 = vadd.f32 0.0, %v1161
        %1163 = vmatmul.f32.gmra.mxu0 %v1039
        %v1164 = vpop.f32.mrf.mxu0
        %v1165 = vadd.f32 0.0, %v1164
        %1166 = vmatmul.f32.gmra.mxu0 %v1127
        %v1167 = vpop.f32.mrf.mxu0
        %v1168 = vadd.f32 0.0, %v1167
        %1169 = vdwg.mxu0
        %v1170 = vadd.f32 %v1103, %v1147
        %v1171 = vadd.f32 %v1106, %v1150
        %v1172 = vadd.f32 %v1109, %v1153
        %v1173 = vadd.f32 %v1112, %v1156
        %v1174 = vadd.f32 %v1115, %v1159
        %v1175 = vadd.f32 %v1118, %v1162
        %v1176 = vadd.f32 %v1121, %v1165
        %v1177 = vadd.f32 %v1124, %v1168
        %v1178 = vld [vmem:[#allocation3 + $0x8] sm:$0xff]
        %v1179 = vld [vmem:[#allocation3 + $0x20] sm:$0xff]
        %v1180 = vld [vmem:[#allocation3 + $0x38] sm:$0xff]
        %v1181 = vld [vmem:[#allocation3 + $0x50] sm:$0xff]
        %v1182 = vld [vmem:[#allocation3 + $0x68] sm:$0xff]
        %v1183 = vld [vmem:[#allocation3 + $0x80] sm:$0xff]
        %v1184 = vld [vmem:[#allocation3 + $0x98] sm:$0xff]
        %v1185 = vld [vmem:[#allocation3 + $0xb0] sm:$0xff]
        %v1186 = vld [vmem:[#allocation3 + $0xc8] sm:$0xff]
        %v1187 = vld [vmem:[#allocation3 + $0xe0] sm:$0xff]
        %v1189 = vsel %vm349, %v1178, 0
        %v1192 = vsel %vm349, %v1179, 0
        %v1195 = vsel %vm349, %v1180, 0
        %v1198 = vsel %vm349, %v1181, 0
        %v1201 = vsel %vm349, %v1182, 0
        %v1204 = vsel %vm349, %v1183, 0
        %v1207 = vsel %vm349, %v1184, 0
        %v1210 = vsel %vm349, %v1185, 0
        %1212 = vmatpush.msra.mxu0 0.0
        %1213 = vmatpush.msra.mxu0 0.0
        %1214 = vmatpush.msra.mxu0 0.0
        %1215 = vmatpush.msra.mxu0 0.0
        %1216 = vmatpush.msra.mxu0 0.0
        %1217 = vmatpush.msra.mxu0 0.0
        %1218 = vmatpush.msra.mxu0 0.0
        %1219 = vmatpush.msra.mxu0 0.0
        %1220 = vmatpush.msra.mxu0 0.0
        %1221 = vmatpush.msra.mxu0 0.0
        %1222 = vmatpush.msra.mxu0 0.0
        %1223 = vmatpush.msra.mxu0 0.0
        %1224 = vmatpush.msra.mxu0 0.0
        %1225 = vmatpush.msra.mxu0 0.0
        %1226 = vmatpush.msra.mxu0 0.0
        %1227 = vmatpush.msra.mxu0 %v999
        %1228 = vmatmul.f32.gmra.mxu0 %v1189
        %v1229 = vpop.f32.mrf.mxu0
        %v1230 = vadd.f32 0.0, %v1229
        %1231 = vmatmul.f32.gmra.mxu0 %v1192
        %v1232 = vpop.f32.mrf.mxu0
        %v1233 = vadd.f32 0.0, %v1232
        %1234 = vmatmul.f32.gmra.mxu0 %v1195
        %v1235 = vpop.f32.mrf.mxu0
        %v1236 = vadd.f32 0.0, %v1235
        %1237 = vmatmul.f32.gmra.mxu0 %v1198
        %v1238 = vpop.f32.mrf.mxu0
        %v1239 = vadd.f32 0.0, %v1238
        %1240 = vmatmul.f32.gmra.mxu0 %v1201
        %v1241 = vpop.f32.mrf.mxu0
        %v1242 = vadd.f32 0.0, %v1241
        %1243 = vmatmul.f32.gmra.mxu0 %v1204
        %v1244 = vpop.f32.mrf.mxu0
        %v1245 = vadd.f32 0.0, %v1244
        %1246 = vmatmul.f32.gmra.mxu0 %v1207
        %v1247 = vpop.f32.mrf.mxu0
        %v1248 = vadd.f32 0.0, %v1247
        %1249 = vmatmul.f32.gmra.mxu0 %v1210
        %v1250 = vpop.f32.mrf.mxu0
        %v1251 = vadd.f32 0.0, %v1250
        %1252 = vdwg.mxu0
        %v1253 = vadd.f32 %v1170, %v1230
        %v1254 = vadd.f32 %v1171, %v1233
        %v1255 = vadd.f32 %v1172, %v1236
        %v1256 = vadd.f32 %v1173, %v1239
        %v1257 = vadd.f32 %v1174, %v1242
        %v1258 = vadd.f32 %v1175, %v1245
        %v1259 = vadd.f32 %v1176, %v1248
        %v1260 = vadd.f32 %v1177, %v1251
        %v1262 = vsel %vm349, %v1186, 0
        %1264 = vmatpush.msra.mxu0 0.0
        %1265 = vmatpush.msra.mxu0 0.0
        %1266 = vmatpush.msra.mxu0 0.0
        %1267 = vmatpush.msra.mxu0 0.0
        %1268 = vmatpush.msra.mxu0 0.0
        %1269 = vmatpush.msra.mxu0 0.0
        %1270 = vmatpush.msra.mxu0 0.0
        %1271 = vmatpush.msra.mxu0 0.0
        %1272 = vmatpush.msra.mxu0 0.0
        %1273 = vmatpush.msra.mxu0 0.0
        %1274 = vmatpush.msra.mxu0 0.0
        %1275 = vmatpush.msra.mxu0 0.0
        %1276 = vmatpush.msra.mxu0 0.0
        %1277 = vmatpush.msra.mxu0 0.0
        %1278 = vmatpush.msra.mxu0 0.0
        %1279 = vmatpush.msra.mxu0 %v1002
        %1280 = vmatmul.f32.gmra.mxu0 %v1192
        %v1281 = vpop.f32.mrf.mxu0
        %v1282 = vadd.f32 0.0, %v1281
        %1283 = vmatmul.f32.gmra.mxu0 %v1195
        %v1284 = vpop.f32.mrf.mxu0
        %v1285 = vadd.f32 0.0, %v1284
        %1286 = vmatmul.f32.gmra.mxu0 %v1198
        %v1287 = vpop.f32.mrf.mxu0
        %v1288 = vadd.f32 0.0, %v1287
        %1289 = vmatmul.f32.gmra.mxu0 %v1201
        %v1290 = vpop.f32.mrf.mxu0
        %v1291 = vadd.f32 0.0, %v1290
        %1292 = vmatmul.f32.gmra.mxu0 %v1204
        %v1293 = vpop.f32.mrf.mxu0
        %v1294 = vadd.f32 0.0, %v1293
        %1295 = vmatmul.f32.gmra.mxu0 %v1207
        %v1296 = vpop.f32.mrf.mxu0
        %v1297 = vadd.f32 0.0, %v1296
        %1298 = vmatmul.f32.gmra.mxu0 %v1210
        %v1299 = vpop.f32.mrf.mxu0
        %v1300 = vadd.f32 0.0, %v1299
        %1301 = vmatmul.f32.gmra.mxu0 %v1262
        %v1302 = vpop.f32.mrf.mxu0
        %v1303 = vadd.f32 0.0, %v1302
        %1304 = vdwg.mxu0
        %v1305 = vadd.f32 %v1253, %v1282
        %v1306 = vadd.f32 %v1254, %v1285
        %v1307 = vadd.f32 %v1255, %v1288
        %v1308 = vadd.f32 %v1256, %v1291
        %v1309 = vadd.f32 %v1257, %v1294
        %v1310 = vadd.f32 %v1258, %v1297
        %v1311 = vadd.f32 %v1259, %v1300
        %v1312 = vadd.f32 %v1260, %v1303
        %v1314 = vsel %vm349, %v1187, 0
        %1316 = vmatpush.msra.mxu0 0.0
        %1317 = vmatpush.msra.mxu0 0.0
        %1318 = vmatpush.msra.mxu0 0.0
        %1319 = vmatpush.msra.mxu0 0.0
        %1320 = vmatpush.msra.mxu0 0.0
        %1321 = vmatpush.msra.mxu0 0.0
        %1322 = vmatpush.msra.mxu0 0.0
        %1323 = vmatpush.msra.mxu0 0.0
        %1324 = vmatpush.msra.mxu0 0.0
        %1325 = vmatpush.msra.mxu0 0.0
        %1326 = vmatpush.msra.mxu0 0.0
        %1327 = vmatpush.msra.mxu0 0.0
        %1328 = vmatpush.msra.mxu0 0.0
        %1329 = vmatpush.msra.mxu0 0.0
        %1330 = vmatpush.msra.mxu0 0.0
        %1331 = vmatpush.msra.mxu0 %v1005
        %1332 = vmatmul.f32.gmra.mxu0 %v1195
        %v1333 = vpop.f32.mrf.mxu0
        %v1334 = vadd.f32 0.0, %v1333
        %1335 = vmatmul.f32.gmra.mxu0 %v1198
        %v1336 = vpop.f32.mrf.mxu0
        %v1337 = vadd.f32 0.0, %v1336
        %1338 = vmatmul.f32.gmra.mxu0 %v1201
        %v1339 = vpop.f32.mrf.mxu0
        %v1340 = vadd.f32 0.0, %v1339
        %1341 = vmatmul.f32.gmra.mxu0 %v1204
        %v1342 = vpop.f32.mrf.mxu0
        %v1343 = vadd.f32 0.0, %v1342
        %1344 = vmatmul.f32.gmra.mxu0 %v1207
        %v1345 = vpop.f32.mrf.mxu0
        %v1346 = vadd.f32 0.0, %v1345
        %1347 = vmatmul.f32.gmra.mxu0 %v1210
        %v1348 = vpop.f32.mrf.mxu0
        %v1349 = vadd.f32 0.0, %v1348
        %1350 = vmatmul.f32.gmra.mxu0 %v1262
        %v1351 = vpop.f32.mrf.mxu0
        %v1352 = vadd.f32 0.0, %v1351
        %1353 = vmatmul.f32.gmra.mxu0 %v1314
        %v1354 = vpop.f32.mrf.mxu0
        %v1355 = vadd.f32 0.0, %v1354
        %1356 = vdwg.mxu0
        %v1357 = vadd.f32 %v1305, %v1334
        %v1358 = vadd.f32 %v1306, %v1337
        %v1359 = vadd.f32 %v1307, %v1340
        %v1360 = vadd.f32 %v1308, %v1343
        %v1361 = vadd.f32 %v1309, %v1346
        %v1362 = vadd.f32 %v1310, %v1349
        %v1363 = vadd.f32 %v1311, %v1352
        %v1364 = vadd.f32 %v1312, %v1355
        %v1365 = vld [vmem:[#allocation3 + $0x9] sm:$0xff]
        %v1366 = vld [vmem:[#allocation3 + $0x21] sm:$0xff]
        %v1367 = vld [vmem:[#allocation3 + $0x39] sm:$0xff]
        %v1368 = vld [vmem:[#allocation3 + $0x51] sm:$0xff]
        %v1369 = vld [vmem:[#allocation3 + $0x69] sm:$0xff]
        %v1370 = vld [vmem:[#allocation3 + $0x81] sm:$0xff]
        %v1371 = vld [vmem:[#allocation3 + $0x99] sm:$0xff]
        %v1372 = vld [vmem:[#allocation3 + $0xb1] sm:$0xff]
        %v1373 = vld [vmem:[#allocation3 + $0xc9] sm:$0xff]
        %v1374 = vld [vmem:[#allocation3 + $0xe1] sm:$0xff]
        %v1376 = vsel %vm349, %v1365, 0
        %v1379 = vsel %vm349, %v1366, 0
        %v1382 = vsel %vm349, %v1367, 0
        %v1385 = vsel %vm349, %v1368, 0
        %v1388 = vsel %vm349, %v1369, 0
        %v1391 = vsel %vm349, %v1370, 0
        %v1394 = vsel %vm349, %v1371, 0
        %v1397 = vsel %vm349, %v1372, 0
        %1399 = vmatpush.msra.mxu0 0.0
        %1400 = vmatpush.msra.mxu0 0.0
        %1401 = vmatpush.msra.mxu0 0.0
        %1402 = vmatpush.msra.mxu0 0.0
        %1403 = vmatpush.msra.mxu0 0.0
        %1404 = vmatpush.msra.mxu0 0.0
        %1405 = vmatpush.msra.mxu0 0.0
        %1406 = vmatpush.msra.mxu0 0.0
        %1407 = vmatpush.msra.mxu0 0.0
        %1408 = vmatpush.msra.mxu0 0.0
        %1409 = vmatpush.msra.mxu0 0.0
        %1410 = vmatpush.msra.mxu0 0.0
        %1411 = vmatpush.msra.mxu0 0.0
        %1412 = vmatpush.msra.mxu0 0.0
        %1413 = vmatpush.msra.mxu0 0.0
        %1414 = vmatpush.msra.mxu0 %v1000
        %1415 = vmatmul.f32.gmra.mxu0 %v1376
        %v1416 = vpop.f32.mrf.mxu0
        %v1417 = vadd.f32 0.0, %v1416
        %1418 = vmatmul.f32.gmra.mxu0 %v1379
        %v1419 = vpop.f32.mrf.mxu0
        %v1420 = vadd.f32 0.0, %v1419
        %1421 = vmatmul.f32.gmra.mxu0 %v1382
        %v1422 = vpop.f32.mrf.mxu0
        %v1423 = vadd.f32 0.0, %v1422
        %1424 = vmatmul.f32.gmra.mxu0 %v1385
        %v1425 = vpop.f32.mrf.mxu0
        %v1426 = vadd.f32 0.0, %v1425
        %1427 = vmatmul.f32.gmra.mxu0 %v1388
        %v1428 = vpop.f32.mrf.mxu0
        %v1429 = vadd.f32 0.0, %v1428
        %1430 = vmatmul.f32.gmra.mxu0 %v1391
        %v1431 = vpop.f32.mrf.mxu0
        %v1432 = vadd.f32 0.0, %v1431
        %1433 = vmatmul.f32.gmra.mxu0 %v1394
        %v1434 = vpop.f32.mrf.mxu0
        %v1435 = vadd.f32 0.0, %v1434
        %1436 = vmatmul.f32.gmra.mxu0 %v1397
        %v1437 = vpop.f32.mrf.mxu0
        %v1438 = vadd.f32 0.0, %v1437
        %1439 = vdwg.mxu0
        %v1440 = vadd.f32 %v1357, %v1417
        %v1441 = vadd.f32 %v1358, %v1420
        %v1442 = vadd.f32 %v1359, %v1423
        %v1443 = vadd.f32 %v1360, %v1426
        %v1444 = vadd.f32 %v1361, %v1429
        %v1445 = vadd.f32 %v1362, %v1432
        %v1446 = vadd.f32 %v1363, %v1435
        %v1447 = vadd.f32 %v1364, %v1438
        %v1449 = vsel %vm349, %v1373, 0
        %1451 = vmatpush.msra.mxu0 0.0
        %1452 = vmatpush.msra.mxu0 0.0
        %1453 = vmatpush.msra.mxu0 0.0
        %1454 = vmatpush.msra.mxu0 0.0
        %1455 = vmatpush.msra.mxu0 0.0
        %1456 = vmatpush.msra.mxu0 0.0
        %1457 = vmatpush.msra.mxu0 0.0
        %1458 = vmatpush.msra.mxu0 0.0
        %1459 = vmatpush.msra.mxu0 0.0
        %1460 = vmatpush.msra.mxu0 0.0
        %1461 = vmatpush.msra.mxu0 0.0
        %1462 = vmatpush.msra.mxu0 0.0
        %1463 = vmatpush.msra.mxu0 0.0
        %1464 = vmatpush.msra.mxu0 0.0
        %1465 = vmatpush.msra.mxu0 0.0
        %1466 = vmatpush.msra.mxu0 %v1003
        %1467 = vmatmul.f32.gmra.mxu0 %v1379
        %v1468 = vpop.f32.mrf.mxu0
        %v1469 = vadd.f32 0.0, %v1468
        %1470 = vmatmul.f32.gmra.mxu0 %v1382
        %v1471 = vpop.f32.mrf.mxu0
        %v1472 = vadd.f32 0.0, %v1471
        %1473 = vmatmul.f32.gmra.mxu0 %v1385
        %v1474 = vpop.f32.mrf.mxu0
        %v1475 = vadd.f32 0.0, %v1474
        %1476 = vmatmul.f32.gmra.mxu0 %v1388
        %v1477 = vpop.f32.mrf.mxu0
        %v1478 = vadd.f32 0.0, %v1477
        %1479 = vmatmul.f32.gmra.mxu0 %v1391
        %v1480 = vpop.f32.mrf.mxu0
        %v1481 = vadd.f32 0.0, %v1480
        %1482 = vmatmul.f32.gmra.mxu0 %v1394
        %v1483 = vpop.f32.mrf.mxu0
        %v1484 = vadd.f32 0.0, %v1483
        %1485 = vmatmul.f32.gmra.mxu0 %v1397
        %v1486 = vpop.f32.mrf.mxu0
        %v1487 = vadd.f32 0.0, %v1486
        %1488 = vmatmul.f32.gmra.mxu0 %v1449
        %v1489 = vpop.f32.mrf.mxu0
        %v1490 = vadd.f32 0.0, %v1489
        %1491 = vdwg.mxu0
        %v1492 = vadd.f32 %v1440, %v1469
        %v1493 = vadd.f32 %v1441, %v1472
        %v1494 = vadd.f32 %v1442, %v1475
        %v1495 = vadd.f32 %v1443, %v1478
        %v1496 = vadd.f32 %v1444, %v1481
        %v1497 = vadd.f32 %v1445, %v1484
        %v1498 = vadd.f32 %v1446, %v1487
        %v1499 = vadd.f32 %v1447, %v1490
        %v1501 = vsel %vm349, %v1374, 0
        %1503 = vmatpush.msra.mxu0 0.0
        %1504 = vmatpush.msra.mxu0 0.0
        %1505 = vmatpush.msra.mxu0 0.0
        %1506 = vmatpush.msra.mxu0 0.0
        %1507 = vmatpush.msra.mxu0 0.0
        %1508 = vmatpush.msra.mxu0 0.0
        %1509 = vmatpush.msra.mxu0 0.0
        %1510 = vmatpush.msra.mxu0 0.0
        %1511 = vmatpush.msra.mxu0 0.0
        %1512 = vmatpush.msra.mxu0 0.0
        %1513 = vmatpush.msra.mxu0 0.0
        %1514 = vmatpush.msra.mxu0 0.0
        %1515 = vmatpush.msra.mxu0 0.0
        %1516 = vmatpush.msra.mxu0 0.0
        %1517 = vmatpush.msra.mxu0 0.0
        %1518 = vmatpush.msra.mxu0 %v1006
        %1519 = vmatmul.f32.gmra.mxu0 %v1382
        %v1520 = vpop.f32.mrf.mxu0
        %v1521 = vadd.f32 0.0, %v1520
        %1522 = vmatmul.f32.gmra.mxu0 %v1385
        %v1523 = vpop.f32.mrf.mxu0
        %v1524 = vadd.f32 0.0, %v1523
        %1525 = vmatmul.f32.gmra.mxu0 %v1388
        %v1526 = vpop.f32.mrf.mxu0
        %v1527 = vadd.f32 0.0, %v1526
        %1528 = vmatmul.f32.gmra.mxu0 %v1391
        %v1529 = vpop.f32.mrf.mxu0
        %v1530 = vadd.f32 0.0, %v1529
        %1531 = vmatmul.f32.gmra.mxu0 %v1394
        %v1532 = vpop.f32.mrf.mxu0
        %v1533 = vadd.f32 0.0, %v1532
        %1534 = vmatmul.f32.gmra.mxu0 %v1397
        %v1535 = vpop.f32.mrf.mxu0
        %v1536 = vadd.f32 0.0, %v1535
        %1537 = vmatmul.f32.gmra.mxu0 %v1449
        %v1538 = vpop.f32.mrf.mxu0
        %v1539 = vadd.f32 0.0, %v1538
        %1540 = vmatmul.f32.gmra.mxu0 %v1501
        %v1541 = vpop.f32.mrf.mxu0
        %v1542 = vadd.f32 0.0, %v1541
        %1543 = vdwg.mxu0
        %v1544 = vadd.f32 %v1492, %v1521
        %v1545 = vadd.f32 %v1493, %v1524
        %v1546 = vadd.f32 %v1494, %v1527
        %v1547 = vadd.f32 %v1495, %v1530
        %v1548 = vadd.f32 %v1496, %v1533
        %v1549 = vadd.f32 %v1497, %v1536
        %v1550 = vadd.f32 %v1498, %v1539
        %v1551 = vadd.f32 %v1499, %v1542
        %v1553 = vperm.slane %v988, 0
        %v1555 = vadd.f32 %v1544, %v1553
        %v1556 = vadd.f32 %v1545, %v1553
        %v1557 = vadd.f32 %v1546, %v1553
        %v1558 = vadd.f32 %v1547, %v1553
        %v1559 = vadd.f32 %v1548, %v1553
        %v1560 = vadd.f32 %v1549, %v1553
        %v1561 = vadd.f32 %v1550, %v1553
        %v1562 = vadd.f32 %v1551, %v1553
        %v1563 = vmax.f32 %v1555, 0.0
        %v1564 = vmax.f32 %v1556, 0.0
        %v1565 = vmax.f32 %v1557, 0.0
        %v1566 = vmax.f32 %v1558, 0.0
        %v1567 = vmax.f32 %v1559, 0.0
        %v1568 = vmax.f32 %v1560, 0.0
        %v1569 = vmax.f32 %v1561, 0.0
        %v1570 = vmax.f32 %v1562, 0.0
        %1571 = vst.msk [vmem:[%s244] sm:$0xff] %vm349, %v1563
        %1572 = vst.msk [vmem:[%s244 + $0x8] sm:$0xff] %vm349, %v1564
        %1573 = vst.msk [vmem:[%s244 + $0x10] sm:$0xff] %vm349, %v1565
        %1574 = vst.msk [vmem:[%s244 + $0x18] sm:$0xff] %vm349, %v1566
        %1575 = vst.msk [vmem:[%s244 + $0x20] sm:$0xff] %vm349, %v1567
        %1576 = vst.msk [vmem:[%s244 + $0x28] sm:$0xff] %vm349, %v1568
        %1577 = vst.msk [vmem:[%s244 + $0x30] sm:$0xff] %vm349, %v1569
        %1578 = vst.msk [vmem:[%s244 + $0x38] sm:$0xff] %vm349, %v1570
        %s1579 = sand.u32 %s140, 1
        %s1580 = scalar_lea.sflag [#allocation6], %s1579
        %s1581 = sand.u32 %s140, 1
        %s1582 = smul.addr %s1581, 64
        %s1583 = scalar_lea.vmem [#allocation7], %s1582
        // Predicated region
        $region45: #{tpu_custom_call.1} parent=39 // pred_check
          %p1584 = pneg %p150
        $region46: #{tpu_custom_call.1} parent=39 // pred_check_branch
          %1586 = sbr.rel (%p1584) target = $region48
        $region47: #{tpu_custom_call.1} parent=39 // pred_region
          %1588 = vsyncadd %s1580, 0
          %s1589 = smul.addr %s22, 8
          %s1590 = smul.addr %s1589, 8
          %s1591 = scalar_lea.hbm %s5, %s1590
          %s1592 = sshll.u32 %s1583, 4
          %s1593 = int_to_ptr.vmem [resolvable:$true] %s1592
          %s1594 = sshll.u32 %s1591, 4
          %s1595 = int_to_ptr.hbm [resolvable:$true] %s1594
          %1600 = dma.vmem_to_hbm [thread:$0]  %s1593, 1024, %s1595, %s1580, 128, 128, 8
        $region48: #{tpu_custom_call.1} parent=39 // pred_fallthru
          _
      $region40: #{tpu_custom_call.1} parent=5 // pred_fallthru
        _
      %p1601 = scmp.le.s32.totalorder 2, %s17
      // Predicated region
      $region49: #{tpu_custom_call.1} parent=5 // pred_check
        %p1602 = pneg %p1601
      $region50: #{tpu_custom_call.1} parent=5 // pred_check_branch
        %1604 = sbr.rel (%p1602) target = $region52
      $region51: #{tpu_custom_call.1} parent=5 // pred_region
        %s1605 = ssub.s32 %s17, 2
        // Predicated region
        $region53: #{tpu_custom_call.1} parent=51 // pred_check
          %p1606 = pneg %p156
        $region54: #{tpu_custom_call.1} parent=51 // pred_check_branch
          %1608 = sbr.rel (%p1606) target = $region56
        $region55: #{tpu_custom_call.1} parent=51 // pred_region
          %s1609 = sand.u32 %s141, 1
          %s1610 = scalar_lea.sflag [#allocation6], %s1609
          %s1611 = sand.u32 %s141, 1
          %s1612 = smul.addr %s1611, 64
          %s1613 = scalar_lea.vmem [#allocation7], %s1612
          %1615 = dma.done %s1610, 1024
        $region56: #{tpu_custom_call.1} parent=51 // pred_fallthru
          _
      $region52: #{tpu_custom_call.1} parent=5 // pred_fallthru
        _
    $region6: #{tpu_custom_call.1} parent=1 // loop_footer
      %s21 = sadd.s32 1, %s17
    $region7: #{tpu_custom_call.1} parent=1 // loop_footer_branch
      %16 = sbr.rel target = $region3
    $region8: #{tpu_custom_call.1} parent=1 // loop_exit
      _
    %1616 = vsyncpa [#allocation5], 1
    %s1617 = scalar_lea.sflag [#allocation5], 1
    %1618 = vsyncpa %s1617, 1
    %1619 = vsyncpa [#allocation6], 1
    %s1620 = scalar_lea.sflag [#allocation6], 1
    %1621 = vsyncpa %s1620, 1

</llo_original>
